<compile_context>
chip_gen: v5e
topology: v5e:2x2
jax: 0.10.0
libtpu: 0.0.40
codegen_flags: <defaults>
</compile_context>

<pallas_src>
import numpy as np
import jax
import jax.numpy as jnp
from jax.experimental import pallas as pl
from jax.experimental.pallas import tpu as pltpu

EPS = 1e-5
LANE = 128


def _round_up(n, m):
    return ((n + m - 1) // m) * m


def _tpu_budget():
    """(tile_row_target, vmem_limit_bytes) from the detected TPU generation."""
    vmem_cap = None
    try:
        info = pltpu.get_tpu_info()
        vmem_cap = getattr(info, "vmem_capacity_bytes", None)
    except Exception:
        vmem_cap = None
    if vmem_cap is None or vmem_cap <= 64 * 1024 * 1024:
        return 512, 48 * 1024 * 1024          # v7x-class (64 MiB VMEM) or unknown: safe
    return 1024, 96 * 1024 * 1024             # v5e / v6e (128 MiB physical VMEM)


def _fit_tile_target(target, gran, cin_p, hdim_p, cout_p, itemsize,
                     vmem_limit, weight_bytes):
    """Clamp the row-tile target so double-buffered blocks + scratch fit the budget."""
    budget = int(vmem_limit * 0.7) - 2 * weight_bytes
    per_row = (2 * cin_p + 2 * cout_p) * itemsize       # double-buffered body / output
    per_row += (cin_p + hdim_p) * itemsize              # xwin / h-window scratch
    per_row += (hdim_p + cout_p) * 4                    # f32 accumulators
    rows = max(budget, 0) // max(per_row, 1)
    rows = (rows // gran) * gran
    return int(max(gran, min(target, rows)))


def _choose_tile(L, target, gran):
    """Largest divisor of L that is <= target (preferring sublane-granular ones)."""
    if L <= target:
        return L
    best = None
    d = gran
    while d <= target:
        if L % d == 0:
            best = d
        d += gran
    if best is not None:
        return best
    for d in range(target, max(gran - 1, 0), -1):
        if L % d == 0:
            return d
    # TODO(synk): awkward (prime-ish) L falls back to a single tile; a masked short
    # last tile would bound VMEM for that case.
    return L


# --------------------------- fused CDILBlock kernel ---------------------------

def _make_block_kernel(*, TL, dil, ks, HL, HR, HLr, HRr,
                       cin_p, hdim_p, cout_p, has_proj, halo_dma):
    pad_total = dil * (ks - 1)
    TLh = TL + pad_total          # rows of the intermediate h needed per output tile
    WIN = TL + HL + HR            # rows of the circular x window per tile

    def kernel(*refs):
        it = iter(refs)
        x_any = next(it) if halo_dma else None
        body_ref = next(it)
        if not halo_dma:
            lh_ref = next(it) if HL > 0 else None
            rh_ref = next(it) if HR > 0 else None
        w1_ref = next(it)
        b1_ref = next(it)
        w2_ref = next(it)
        b2_ref = next(it)
        if has_proj:
            wr_ref = next(it)
            br_ref = next(it)
        o_ref = next(it)
        xwin = next(it)                        # VMEM (WIN, cin_p), compute dtype
        hwin = next(it)                        # VMEM (TLh, hdim_p), compute dtype
        if halo_dma:
            lh_scr = next(it) if HL > 0 else None
            rh_scr = next(it) if HR > 0 else None
            sem = next(it)

        x_body = body_ref[0, :, :]             # (TL, cin_p), compute dtype

        # ---- assemble circular window [left halo | body | right halo] in VMEM ----
        if halo_dma:
            b = pl.program_id(0)
            t = pl.program_id(1)
            nT = pl.num_programs(1)
            cp_l = cp_r = None
            if HL > 0:
                # left halo = last HL rows of tile (t-1) mod nT; fetch a sublane-rounded slab
                prev_t = (t + nT - 1) % nT
                cp_l = pltpu.make_async_copy(
                    x_any.at[b, pl.ds(prev_t * TL + (TL - HLr), HLr), :],
                    lh_scr, sem.at[0])
                cp_l.start()
            if HR > 0:
                # right halo = first HR rows of tile (t+1) mod nT
                next_t = (t + 1) % nT
                cp_r = pltpu.make_async_copy(
                    x_any.at[b, pl.ds(next_t * TL, HRr), :],
                    rh_scr, sem.at[1])
                cp_r.start()
            xwin[HL:HL + TL, :] = x_body       # overlaps the halo DMAs
            if cp_l is not None:
                cp_l.wait()
                xwin[0:HL, :] = lh_scr[HLr - HL:HLr, :]
            if cp_r is not None:
                cp_r.wait()
                xwin[HL + TL:WIN, :] = rh_scr[0:HR, :]
        else:
            if HL > 0:
                xwin[0:HL, :] = lh_ref[0, 0, :, :]
            xwin[HL:HL + TL, :] = x_body
            if HR > 0:
                xwin[HL + TL:WIN, :] = rh_ref[0, 0, :, :]

        # ---- conv1 (+ folded bn1): ks accumulated MXU matmuls over 128-aligned taps ----
        acc1 = jnp.dot(xwin[0:TLh, :], w1_ref[0:cin_p, :],
                       preferred_element_type=jnp.float32)
        for j in range(1, ks):
            acc1 = acc1 + jnp.dot(xwin[j * dil:j * dil + TLh, :],
                                  w1_ref[j * cin_p:(j + 1) * cin_p, :],
                                  preferred_element_type=jnp.float32)
        # bias + relu with the compute-dtype cast fused into the h-window store
        hwin[...] = jnp.maximum(acc1 + b1_ref[...], 0.0).astype(hwin.dtype)

        # ---- conv2 (+ folded bn2) ----
        acc2 = jnp.dot(hwin[0:TL, :], w2_ref[0:hdim_p, :],
                       preferred_element_type=jnp.float32)
        for j in range(1, ks):
            acc2 = acc2 + jnp.dot(hwin[j * dil:j * dil + TL, :],
                                  w2_ref[j * hdim_p:(j + 1) * hdim_p, :],
                                  preferred_element_type=jnp.float32)
        y = jnp.maximum(acc2 + b2_ref[...], 0.0)

        # ---- residual: identity when c_in == c_out, else 1x1-conv projection ----
        if has_proj:
            res = jnp.dot(x_body, wr_ref[...], preferred_element_type=jnp.float32)
            res = res + br_ref[...]
        else:
            res = x_body.astype(jnp.float32)

        # PyTorch: relu(out) + res, with out already relu'ed -> y + res.
        o_ref[0, :, :] = (y + res).astype(o_ref.dtype)

    return kernel


def cdil_block(x_p, pk, *, dil, ks, tl_target, vmem_limit):
    """One fused CDILBlock on channel-padded, channels-last input (B, L, Cin_p)."""
    assert ks >= 2, "ks == 1 degenerates to a pointwise matmul (not implemented)"
    B, L, cin_p = x_p.shape
    hdim_p, cout_p = pk["hdim_p"], pk["cout_p"]
    has_proj = pk["wres"] is not None
    if not has_proj:
        assert cin_p == cout_p
    cdt = x_p.dtype
    itemsize = jnp.dtype(cdt).itemsize
    gran = max(8, 32 // itemsize)             # dtype-aware sublane granularity

    pad_total = dil * (ks - 1)                # PyTorch 'same': left = total // 2
    left = pad_total // 2
    right = pad_total - left
    HL, HR = 2 * left, 2 * right              # window halo per side for the fused convs

    weight_bytes = (pk["w1s"].size + pk["w2s"].size) * itemsize
    if has_proj:
        weight_bytes += pk["wres"].size * itemsize
    target = _fit_tile_target(tl_target, gran, cin_p, hdim_p, cout_p, itemsize,
                              vmem_limit, weight_bytes)
    TL = _choose_tile(L, target, gran)
    nT = L // TL
    HLr, HRr = _round_up(HL, gran), _round_up(HR, gran)
    # Fast path: halos are contiguous sublane-rounded slabs of the neighbouring tile,
    # fetched by in-kernel DMA.  Deep-dilation blocks (halo > tile) fall back to a
    # host-side modular gather.
    halo_dma = (HLr <= TL) and (HRr <= TL)

    if halo_dma:
        args = [x_p, x_p]
        in_specs = [pl.BlockSpec(memory_space=pl.ANY),
                    pl.BlockSpec((1, TL, cin_p), lambda b, t: (b, t, 0))]
    else:
        args = [x_p]
        in_specs = [pl.BlockSpec((1, TL, cin_p), lambda b, t: (b, t, 0))]
        starts = np.arange(nT) * TL
        if HL > 0:
            idx_l = (starts[:, None] - HL + np.arange(HL)[None, :]) % L
            lh = x_p[:, idx_l.reshape(-1), :].reshape(B, nT, HL, cin_p)
            args.append(lh)
            in_specs.append(pl.BlockSpec((1, 1, HL, cin_p), lambda b, t: (b, t, 0, 0)))
        if HR > 0:
            idx_r = (starts[:, None] + TL + np.arange(HR)[None, :]) % L
            rh = x_p[:, idx_r.reshape(-1), :].reshape(B, nT, HR, cin_p)
            args.append(rh)
            in_specs.append(pl.BlockSpec((1, 1, HR, cin_p), lambda b, t: (b, t, 0, 0)))

    # Weights / folded-BN biases: constant index maps => DMA'd once, then revisited.
    args += [pk["w1s"], pk["b1"], pk["w2s"], pk["b2"]]
    in_specs += [
        pl.BlockSpec((ks * cin_p, hdim_p), lambda b, t: (0, 0)),
        pl.BlockSpec((1, hdim_p), lambda b, t: (0, 0)),
        pl.BlockSpec((ks * hdim_p, cout_p), lambda b, t: (0, 0)),
        pl.BlockSpec((1, cout_p), lambda b, t: (0, 0)),
    ]
    if has_proj:
        args += [pk["wres"], pk["bres"]]
        in_specs += [
            pl.BlockSpec((cin_p, cout_p), lambda b, t: (0, 0)),
            pl.BlockSpec((1, cout_p), lambda b, t: (0, 0)),
        ]

    TLh = TL + pad_total
    WIN = TL + HL + HR
    scratch_shapes = [pltpu.VMEM((WIN, cin_p), cdt),
                      pltpu.VMEM((TLh, hdim_p), cdt)]
    if halo_dma:
        if HL > 0:
            scratch_shapes.append(pltpu.VMEM((HLr, cin_p), cdt))
        if HR > 0:
            scratch_shapes.append(pltpu.VMEM((HRr, cin_p), cdt))
        scratch_shapes.append(pltpu.SemaphoreType.DMA((2,)))

    kernel = _make_block_kernel(TL=TL, dil=dil, ks=ks, HL=HL, HR=HR, HLr=HLr, HRr=HRr,
                                cin_p=cin_p, hdim_p=hdim_p, cout_p=cout_p,
                                has_proj=has_proj, halo_dma=halo_dma)
    return pl.pallas_call(
        kernel,
        out_shape=jax.ShapeDtypeStruct((B, L, cout_p), cdt),
        grid_spec=pltpu.PrefetchScalarGridSpec(
            num_scalar_prefetch=0,
            grid=(B, nT),
            in_specs=in_specs,
            out_specs=pl.BlockSpec((1, TL, cout_p), lambda b, t: (b, t, 0)),
            scratch_shapes=scratch_shapes,
        ),
        compiler_params=pltpu.CompilerParams(
            dimension_semantics=("parallel", "parallel"),
            vmem_limit_bytes=int(vmem_limit),
        ),
    )(*args)


# --------------------- parameter construction & packing ---------------------

def _bn_params(keys, c):
    gamma = 1.0 + 0.1 * jax.random.normal(keys[0], (c,), jnp.float32)
    beta = 0.1 * jax.random.normal(keys[1], (c,), jnp.float32)
    running_mean = 0.1 * jax.random.normal(keys[2], (c,), jnp.float32)
    running_var = 1.0 + 0.1 * jnp.abs(jax.random.normal(keys[3], (c,), jnp.float32))
    scale = gamma / jnp.sqrt(running_var + EPS)
    bias = beta - running_mean * scale
    return scale, bias


def init_cdil_layer(key, dim_in, dim_out, hdim, ks):
    """Raw (unpadded) parameters; conv weights stored as (ks, Cin, Cout)."""
    params = []
    c_prev = dim_in
    for i, c_out in enumerate(dim_out):
        c_in = c_prev
        keys = jax.random.split(jax.random.fold_in(key, i), 12)
        w1 = jax.random.normal(keys[0], (ks, c_in, hdim), jnp.float32) / jnp.sqrt(c_in * ks)
        s1, b1 = _bn_params(keys[1:5], hdim)
        w2 = jax.random.normal(keys[5], (ks, hdim, c_out), jnp.float32) / jnp.sqrt(hdim * ks)
        s2, b2 = _bn_params(keys[6:10], c_out)
        if c_in != c_out:
            wres = jax.random.normal(keys[10], (c_in, c_out), jnp.float32) / jnp.sqrt(c_in)
            bres = 0.1 * jax.random.normal(keys[11], (c_out,), jnp.float32)
        else:
            wres, bres = None, None       # identity residual (no projection)
        params.append(dict(w1=w1, s1=s1, b1=b1, w2=w2, s2=s2, b2=b2,
                           wres=wres, bres=bres))
        c_prev = c_out
    return params


def _pack_block(p, compute_dtype):
    """Pad channels to multiples of 128 and fold the BN scales into the conv weights,
    stacked as (ks*Cin_p, Cout_p) so each conv tap is a 128-aligned weight slab."""
    ks, c_in, hdim = p["w1"].shape
    c_out = p["w2"].shape[2]
    cin_p, h_p, cout_p = (_round_up(c, LANE) for c in (c_in, hdim, c_out))

    w1f = p["w1"] * p["s1"][None, None, :]
    w1s = jnp.pad(w1f, ((0, 0), (0, cin_p - c_in), (0, h_p - hdim)))
    w1s = w1s.reshape(ks * cin_p, h_p).astype(compute_dtype)
    b1 = jnp.pad(p["b1"], (0, h_p - hdim)).reshape(1, h_p).astype(jnp.float32)

    w2f = p["w2"] * p["s2"][None, None, :]
    w2s = jnp.pad(w2f, ((0, 0), (0, h_p - hdim), (0, cout_p - c_out)))
    w2s = w2s.reshape(ks * h_p, cout_p).astype(compute_dtype)
    b2 = jnp.pad(p["b2"], (0, cout_p - c_out)).reshape(1, cout_p).astype(jnp.float32)

    if p["wres"] is None:
        wres, bres = None, None
    else:
        wres = jnp.pad(p["wres"], ((0, cin_p - c_in), (0, cout_p - c_out))).astype(compute_dtype)
        bres = jnp.pad(p["bres"], (0, cout_p - c_out)).reshape(1, cout_p).astype(jnp.float32)
    return dict(w1s=w1s, b1=b1, w2s=w2s, b2=b2, wres=wres, bres=bres,
                ks=ks, cin=c_in, cout=c_out, cin_p=cin_p, hdim_p=h_p, cout_p=cout_p)


def pack_cdil_layer(params, compute_dtype=jnp.bfloat16):
    """Fold BN into conv weights, pad channels, cast -- runs ONCE outside the forward."""
    return [_pack_block(p, compute_dtype) for p in params]


def cdil_layer_apply(packed, x_ncl, ks, *, tl_target=None, vmem_limit=None):
    """CDILLayer forward.  Accepts / returns the PyTorch NCW layout (B, C, L)."""
    if tl_target is None or vmem_limit is None:
        auto_target, auto_vmem = _tpu_budget()
        tl_target = auto_target if tl_target is None else tl_target
        vmem_limit = auto_vmem if vmem_limit is None else vmem_limit
    compute_dtype = packed[0]["w1s"].dtype
    B, c_in, L = x_ncl.shape
    assert c_in == packed[0]["cin"]
    cin_p = packed[0]["cin_p"]
    x = jnp.transpose(x_ncl, (0, 2, 1))                        # NCW -> NLC
    x = jnp.pad(x, ((0, 0), (0, 0), (0, cin_p - c_in))).astype(compute_dtype)
    for i, pk in enumerate(packed):
        x = cdil_block(x, pk, dil=2 ** i, ks=ks,
                       tl_target=tl_target, vmem_limit=vmem_limit)
    c_out = packed[-1]["cout"]
    x = x[:, :, :c_out].astype(jnp.float32)
    return jnp.transpose(x, (0, 2, 1))                         # NLC -> NCW


# ---------------- pure-JAX reference for validation ----------------

def _ref_circ_conv(x, w, dil):
    ks = w.shape[0]
    left = (dil * (ks - 1)) // 2
    out = 0.0
    for j in range(ks):
        r = jnp.roll(x, left - j * dil, axis=1)  # r[l] = x[(l + j*dil - left) mod L]
        out = out + jnp.einsum("bli,io->blo", r, w[j])
    return out


def cdil_layer_ref(params, x_ncl, ks):
    x = jnp.transpose(x_ncl, (0, 2, 1))
    for i, p in enumerate(params):
        dil = 2 ** i
        h = jnp.maximum(_ref_circ_conv(x, p["w1"], dil) * p["s1"] + p["b1"], 0.0)
        y = jnp.maximum(_ref_circ_conv(h, p["w2"], dil) * p["s2"] + p["b2"], 0.0)
        if p["wres"] is None:
            res = x
        else:
            res = jnp.einsum("bli,io->blo", x, p["wres"]) + p["bres"]
        x = jnp.maximum(y, 0.0) + res
    return jnp.transpose(x, (0, 2, 1))


if __name__ == "__main__":
    # CDILLayer(dim_in=4, dim_out=[8, 8], hdim=16, ks=3, dropout=0.1)
    B, C_IN, L = 2, 4, 16
    DIM_OUT = [8, 8]
    HDIM = 16
    KS = 3

    key = jax.random.PRNGKey(0)
    k_x, k_p = jax.random.split(key)
    x = jax.random.normal(k_x, (B, C_IN, L), jnp.float32)      # PyTorch NCW input

    params = init_cdil_layer(k_p, C_IN, DIM_OUT, HDIM, KS)
    ref = cdil_layer_ref(params, x, KS)

    # Default bf16 path: bf16 MXU operands / activations, f32 accumulation.
    packed_bf16 = pack_cdil_layer(params, jnp.bfloat16)        # packed once, outside jit
    out = jax.jit(lambda v: cdil_layer_apply(packed_bf16, v, KS))(x)
    out = jax.block_until_ready(out)
    assert out.shape == (B, DIM_OUT[-1], L), out.shape
    assert jnp.allclose(out, ref, atol=1e-1, rtol=1e-1), \
        float(jnp.max(jnp.abs(out - ref)))

    # f32 validation path: matches the reference tightly.
    packed_f32 = pack_cdil_layer(params, jnp.float32)
    out_f32 = jax.jit(lambda v: cdil_layer_apply(packed_f32, v, KS))(x)
    out_f32 = jax.block_until_ready(out_f32)
    assert jnp.allclose(out_f32, ref, atol=1e-4, rtol=1e-4), \
        float(jnp.max(jnp.abs(out_f32 - ref)))

    # Deeper stack (dilations 1..16) exercises BOTH halo paths:
    # in-kernel DMA slabs (dil 1..8) and the modular-gather fallback (dil 16 > L).
    DIM_OUT_DEEP = [8, 8, 8, 8, 8]
    params_deep = init_cdil_layer(k_p, C_IN, DIM_OUT_DEEP, HDIM, KS)
    ref_deep = cdil_layer_ref(params_deep, x, KS)
    packed_deep = pack_cdil_layer(params_deep, jnp.float32)
    out_deep = jax.jit(lambda v: cdil_layer_apply(packed_deep, v, KS))(x)
    out_deep = jax.block_until_ready(out_deep)
    assert out_deep.shape == (B, DIM_OUT_DEEP[-1], L), out_deep.shape
    assert jnp.allclose(out_deep, ref_deep, atol=2e-3, rtol=2e-3), \
        float(jnp.max(jnp.abs(out_deep - ref_deep)))

    print("KERNEL_OK")
</pallas_src>

<mosaic_0001>
module attributes {stable_mosaic.version = 11 : i64} {
  func.func @kernel(%arg0: i32, %arg1: i32, %arg2: memref<2x16x128xbf16, #tpu.memory_space<any>>, %arg3: memref<1x16x128xbf16, #tpu.memory_space<vmem>>, %arg4: memref<384x128xbf16, #tpu.memory_space<vmem>>, %arg5: memref<1x128xf32, #tpu.memory_space<vmem>>, %arg6: memref<384x128xbf16, #tpu.memory_space<vmem>>, %arg7: memref<1x128xf32, #tpu.memory_space<vmem>>, %arg8: memref<128x128xbf16, #tpu.memory_space<vmem>>, %arg9: memref<1x128xf32, #tpu.memory_space<vmem>>, %arg10: memref<1x16x128xbf16, #tpu.memory_space<vmem>>, %arg11: memref<20x128xbf16, #tpu.memory_space<vmem>>, %arg12: memref<18x128xbf16, #tpu.memory_space<vmem>>, %arg13: memref<16x128xbf16, #tpu.memory_space<vmem>>, %arg14: memref<16x128xbf16, #tpu.memory_space<vmem>>, %arg15: memref<2x!tpu.dma_semaphore, #tpu.memory_space<semaphore_mem>>) attributes {dimension_semantics = [#tpu.dimension_semantics<parallel>, #tpu.dimension_semantics<parallel>], iteration_bounds = array<i64: 2, 1>, scalar_prefetch = 0 : i64, scratch_operands = 5 : i64, tpu.core_type = #tpu.core_type<tc>, window_params = [{}, {transform_indices = @transform_1, window_bounds = array<i64: 1, 16, 128>}, {pipeline_mode = #tpu.pipeline_mode<synchronous>, transform_indices = @transform_2, window_bounds = array<i64: 384, 128>}, {pipeline_mode = #tpu.pipeline_mode<synchronous>, transform_indices = @transform_3, window_bounds = array<i64: 1, 128>}, {pipeline_mode = #tpu.pipeline_mode<synchronous>, transform_indices = @transform_4, window_bounds = array<i64: 384, 128>}, {pipeline_mode = #tpu.pipeline_mode<synchronous>, transform_indices = @transform_5, window_bounds = array<i64: 1, 128>}, {pipeline_mode = #tpu.pipeline_mode<synchronous>, transform_indices = @transform_6, window_bounds = array<i64: 128, 128>}, {pipeline_mode = #tpu.pipeline_mode<synchronous>, transform_indices = @transform_7, window_bounds = array<i64: 1, 128>}, {transform_indices = @transform_8, window_bounds = array<i64: 1, 16, 128>}]} {
    %c0 = arith.constant 0 : index
    %c0_0 = arith.constant 0 : index
    %c0_1 = arith.constant 0 : index
    %0 = vector.load %arg3[%c0, %c0_0, %c0_1] : memref<1x16x128xbf16, #tpu.memory_space<vmem>>, vector<1x16x128xbf16>
    %1 = vector.shape_cast %0 : vector<1x16x128xbf16> to vector<16x128xbf16>
    %c1_i32 = arith.constant 1 : i32
    %2 = arith.addi %arg1, %c1_i32 : i32
    %c1_i32_2 = arith.constant 1 : i32
    %3 = arith.subi %2, %c1_i32_2 : i32
    %c1_i32_3 = arith.constant 1 : i32
    %c0_i32 = arith.constant 0 : i32
    %4 = arith.cmpi eq, %c1_i32_3, %c0_i32 : i32
    %c1_i32_4 = arith.constant 1 : i32
    %5 = arith.select %4, %c1_i32_4, %c1_i32_3 : i32
    %6 = arith.remsi %3, %5 : i32
    %c0_i32_5 = arith.constant 0 : i32
    %7 = arith.cmpi ne, %6, %c0_i32_5 : i32
    %c0_i32_6 = arith.constant 0 : i32
    %8 = arith.cmpi slt, %6, %c0_i32_6 : i32
    %c0_i32_7 = arith.constant 0 : i32
    %9 = arith.cmpi slt, %5, %c0_i32_7 : i32
    %10 = arith.xori %8, %9 : i1
    %11 = arith.andi %10, %7 : i1
    %12 = arith.addi %6, %5 : i32
    %13 = arith.select %11, %12, %6 : i32
    %c16_i32 = arith.constant 16 : i32
    %14 = arith.muli %13, %c16_i32 : i32
    %c0_i32_8 = arith.constant 0 : i32
    %15 = arith.addi %14, %c0_i32_8 : i32
    %c0_i32_9 = arith.constant 0 : i32
    %c0_i32_10 = arith.constant 0 : i32
    %16 = tpu.memref_slice %arg2[%arg0, %15, %c0_i32_10] : memref<2x16x128xbf16, #tpu.memory_space<any>> -> memref<1x16x128xbf16, #tpu.memory_space<any>>
    %17 = tpu.memref_squeeze %16 : memref<1x16x128xbf16, #tpu.memory_space<any>> -> memref<16x128xbf16, #tpu.memory_space<any>>
    %18 = tpu.memref_slice %arg15[%c0_i32_9] : memref<2x!tpu.dma_semaphore, #tpu.memory_space<semaphore_mem>> -> memref<1x!tpu.dma_semaphore, #tpu.memory_space<semaphore_mem>>
    %19 = tpu.memref_squeeze %18 : memref<1x!tpu.dma_semaphore, #tpu.memory_space<semaphore_mem>> -> memref<!tpu.dma_semaphore, #tpu.memory_space<semaphore_mem>>
    tpu.enqueue_dma source(%17 : memref<16x128xbf16, #tpu.memory_space<any>>) target(%arg13 : memref<16x128xbf16, #tpu.memory_space<vmem>>) target_semaphore(%19 : memref<!tpu.dma_semaphore, #tpu.memory_space<semaphore_mem>>)
    %c1_i32_11 = arith.constant 1 : i32
    %20 = arith.addi %arg1, %c1_i32_11 : i32
    %c1_i32_12 = arith.constant 1 : i32
    %c0_i32_13 = arith.constant 0 : i32
    %21 = arith.cmpi eq, %c1_i32_12, %c0_i32_13 : i32
    %c1_i32_14 = arith.constant 1 : i32
    %22 = arith.select %21, %c1_i32_14, %c1_i32_12 : i32
    %23 = arith.remsi %20, %22 : i32
    %c0_i32_15 = arith.constant 0 : i32
    %24 = arith.cmpi ne, %23, %c0_i32_15 : i32
    %c0_i32_16 = arith.constant 0 : i32
    %25 = arith.cmpi slt, %23, %c0_i32_16 : i32
    %c0_i32_17 = arith.constant 0 : i32
    %26 = arith.cmpi slt, %22, %c0_i32_17 : i32
    %27 = arith.xori %25, %26 : i1
    %28 = arith.andi %27, %24 : i1
    %29 = arith.addi %23, %22 : i32
    %30 = arith.select %28, %29, %23 : i32
    %c16_i32_18 = arith.constant 16 : i32
    %31 = arith.muli %30, %c16_i32_18 : i32
    %c1_i32_19 = arith.constant 1 : i32
    %c0_i32_20 = arith.constant 0 : i32
    %32 = tpu.memref_slice %arg2[%arg0, %31, %c0_i32_20] : memref<2x16x128xbf16, #tpu.memory_space<any>> -> memref<1x16x128xbf16, #tpu.memory_space<any>>
    %33 = tpu.memref_squeeze %32 : memref<1x16x128xbf16, #tpu.memory_space<any>> -> memref<16x128xbf16, #tpu.memory_space<any>>
    %34 = tpu.memref_slice %arg15[%c1_i32_19] : memref<2x!tpu.dma_semaphore, #tpu.memory_space<semaphore_mem>> -> memref<1x!tpu.dma_semaphore, #tpu.memory_space<semaphore_mem>>
    %35 = tpu.memref_squeeze %34 : memref<1x!tpu.dma_semaphore, #tpu.memory_space<semaphore_mem>> -> memref<!tpu.dma_semaphore, #tpu.memory_space<semaphore_mem>>
    tpu.enqueue_dma source(%33 : memref<16x128xbf16, #tpu.memory_space<any>>) target(%arg14 : memref<16x128xbf16, #tpu.memory_space<vmem>>) target_semaphore(%35 : memref<!tpu.dma_semaphore, #tpu.memory_space<semaphore_mem>>)
    %c2 = arith.constant 2 : index
    %c0_21 = arith.constant 0 : index
    %36 = vector.load %arg11[%c2, %c0_21] : memref<20x128xbf16, #tpu.memory_space<vmem>>, vector<16x128xbf16>
    tpu.vector_store %arg11[%c2, %c0_21], %1 {strides = array<i32>} : memref<20x128xbf16, #tpu.memory_space<vmem>>, vector<16x128xbf16>,
    %c0_i32_22 = arith.constant 0 : i32
    %c0_i32_23 = arith.constant 0 : i32
    %37 = tpu.memref_slice %arg2[%arg0, %15, %c0_i32_23] : memref<2x16x128xbf16, #tpu.memory_space<any>> -> memref<1x16x128xbf16, #tpu.memory_space<any>>
    %38 = tpu.memref_squeeze %37 : memref<1x16x128xbf16, #tpu.memory_space<any>> -> memref<16x128xbf16, #tpu.memory_space<any>>
    %39 = tpu.memref_slice %arg15[%c0_i32_22] : memref<2x!tpu.dma_semaphore, #tpu.memory_space<semaphore_mem>> -> memref<1x!tpu.dma_semaphore, #tpu.memory_space<semaphore_mem>>
    %40 = tpu.memref_squeeze %39 : memref<1x!tpu.dma_semaphore, #tpu.memory_space<semaphore_mem>> -> memref<!tpu.dma_semaphore, #tpu.memory_space<semaphore_mem>>
    tpu.wait_dma2 semaphore(%40 : memref<!tpu.dma_semaphore, #tpu.memory_space<semaphore_mem>>) src(%38 : memref<16x128xbf16, #tpu.memory_space<any>>) dst(%arg13 : memref<16x128xbf16, #tpu.memory_space<vmem>>)
    %c14 = arith.constant 14 : index
    %c0_24 = arith.constant 0 : index
    %41 = vector.load %arg13[%c14, %c0_24] : memref<16x128xbf16, #tpu.memory_space<vmem>>, vector<2x128xbf16>
    %c0_25 = arith.constant 0 : index
    %c0_26 = arith.constant 0 : index
    %42 = vector.load %arg11[%c0_25, %c0_26] : memref<20x128xbf16, #tpu.memory_space<vmem>>, vector<2x128xbf16>
    tpu.vector_store %arg11[%c0_25, %c0_26], %41 {strides = array<i32>} : memref<20x128xbf16, #tpu.memory_space<vmem>>, vector<2x128xbf16>,
    %c1_i32_27 = arith.constant 1 : i32
    %c0_i32_28 = arith.constant 0 : i32
    %43 = tpu.memref_slice %arg2[%arg0, %31, %c0_i32_28] : memref<2x16x128xbf16, #tpu.memory_space<any>> -> memref<1x16x128xbf16, #tpu.memory_space<any>>
    %44 = tpu.memref_squeeze %43 : memref<1x16x128xbf16, #tpu.memory_space<any>> -> memref<16x128xbf16, #tpu.memory_space<any>>
    %45 = tpu.memref_slice %arg15[%c1_i32_27] : memref<2x!tpu.dma_semaphore, #tpu.memory_space<semaphore_mem>> -> memref<1x!tpu.dma_semaphore, #tpu.memory_space<semaphore_mem>>
    %46 = tpu.memref_squeeze %45 : memref<1x!tpu.dma_semaphore, #tpu.memory_space<semaphore_mem>> -> memref<!tpu.dma_semaphore, #tpu.memory_space<semaphore_mem>>
    tpu.wait_dma2 semaphore(%46 : memref<!tpu.dma_semaphore, #tpu.memory_space<semaphore_mem>>) src(%44 : memref<16x128xbf16, #tpu.memory_space<any>>) dst(%arg14 : memref<16x128xbf16, #tpu.memory_space<vmem>>)
    %c0_29 = arith.constant 0 : index
    %c0_30 = arith.constant 0 : index
    %47 = vector.load %arg14[%c0_29, %c0_30] : memref<16x128xbf16, #tpu.memory_space<vmem>>, vector<2x128xbf16>
    %c18 = arith.constant 18 : index
    %c0_31 = arith.constant 0 : index
    %48 = vector.load %arg11[%c18, %c0_31] : memref<20x128xbf16, #tpu.memory_space<vmem>>, vector<2x128xbf16>
    tpu.vector_store %arg11[%c18, %c0_31], %47 {strides = array<i32>} : memref<20x128xbf16, #tpu.memory_space<vmem>>, vector<2x128xbf16>,
    %c0_32 = arith.constant 0 : index
    %c0_33 = arith.constant 0 : index
    %49 = vector.load %arg11[%c0_32, %c0_33] : memref<20x128xbf16, #tpu.memory_space<vmem>>, vector<18x128xbf16>
    %c0_34 = arith.constant 0 : index
    %c0_35 = arith.constant 0 : index
    %50 = vector.load %arg4[%c0_34, %c0_35] : memref<384x128xbf16, #tpu.memory_space<vmem>>, vector<128x128xbf16>
    %cst = arith.constant dense<0.000000e+00> : vector<18x128xf32>
    %51 = tpu.matmul %49, %50, %cst {dimension_numbers = #tpu.dot_dimension_numbers<[1], [0], [0], [1], [0, 0, 1, 1], [], []>} : vector<18x128xbf16>, vector<128x128xbf16>, vector<18x128xf32> -> vector<18x128xf32>
    %c1 = arith.constant 1 : index
    %c0_36 = arith.constant 0 : index
    %52 = vector.load %arg11[%c1, %c0_36] : memref<20x128xbf16, #tpu.memory_space<vmem>>, vector<18x128xbf16>
    %c128 = arith.constant 128 : index
    %c0_37 = arith.constant 0 : index
    %53 = vector.load %arg4[%c128, %c0_37] : memref<384x128xbf16, #tpu.memory_space<vmem>>, vector<128x128xbf16>
    %cst_38 = arith.constant dense<0.000000e+00> : vector<18x128xf32>
    %54 = tpu.matmul %52, %53, %cst_38 {dimension_numbers = #tpu.dot_dimension_numbers<[1], [0], [0], [1], [0, 0, 1, 1], [], []>} : vector<18x128xbf16>, vector<128x128xbf16>, vector<18x128xf32> -> vector<18x128xf32>
    %55 = arith.addf %51, %54 : vector<18x128xf32>
    %c2_39 = arith.constant 2 : index
    %c0_40 = arith.constant 0 : index
    %56 = vector.load %arg11[%c2_39, %c0_40] : memref<20x128xbf16, #tpu.memory_space<vmem>>, vector<18x128xbf16>
    %c256 = arith.constant 256 : index
    %c0_41 = arith.constant 0 : index
    %57 = vector.load %arg4[%c256, %c0_41] : memref<384x128xbf16, #tpu.memory_space<vmem>>, vector<128x128xbf16>
    %cst_42 = arith.constant dense<0.000000e+00> : vector<18x128xf32>
    %58 = tpu.matmul %56, %57, %cst_42 {dimension_numbers = #tpu.dot_dimension_numbers<[1], [0], [0], [1], [0, 0, 1, 1], [], []>} : vector<18x128xbf16>, vector<128x128xbf16>, vector<18x128xf32> -> vector<18x128xf32>
    %59 = arith.addf %55, %58 : vector<18x128xf32>
    %c0_43 = arith.constant 0 : index
    %c0_44 = arith.constant 0 : index
    %60 = vector.load %arg5[%c0_43, %c0_44] : memref<1x128xf32, #tpu.memory_space<vmem>>, vector<1x128xf32>
    %61 = vector.broadcast %60 : vector<1x128xf32> to vector<18x128xf32>
    %62 = arith.addf %59, %61 : vector<18x128xf32>
    %cst_45 = arith.constant 0.000000e+00 : f32
    %63 = vector.broadcast %cst_45 : f32 to vector<18x128xf32>
    %64 = arith.maximumf %62, %63 : vector<18x128xf32>
    %65 = arith.truncf %64 : vector<18x128xf32> to vector<18x128xbf16>
    %c0_46 = arith.constant 0 : index
    %c0_47 = arith.constant 0 : index
    %66 = vector.load %arg12[%c0_46, %c0_47] : memref<18x128xbf16, #tpu.memory_space<vmem>>, vector<18x128xbf16>
    tpu.vector_store %arg12[%c0_46, %c0_47], %65 {strides = array<i32>} : memref<18x128xbf16, #tpu.memory_space<vmem>>, vector<18x128xbf16>,
    %c0_48 = arith.constant 0 : index
    %c0_49 = arith.constant 0 : index
    %67 = vector.load %arg12[%c0_48, %c0_49] : memref<18x128xbf16, #tpu.memory_space<vmem>>, vector<16x128xbf16>
    %c0_50 = arith.constant 0 : index
    %c0_51 = arith.constant 0 : index
    %68 = vector.load %arg6[%c0_50, %c0_51] : memref<384x128xbf16, #tpu.memory_space<vmem>>, vector<128x128xbf16>
    %cst_52 = arith.constant dense<0.000000e+00> : vector<16x128xf32>
    %69 = tpu.matmul %67, %68, %cst_52 {dimension_numbers = #tpu.dot_dimension_numbers<[1], [0], [0], [1], [0, 0, 1, 1], [], []>} : vector<16x128xbf16>, vector<128x128xbf16>, vector<16x128xf32> -> vector<16x128xf32>
    %c1_53 = arith.constant 1 : index
    %c0_54 = arith.constant 0 : index
    %70 = vector.load %arg12[%c1_53, %c0_54] : memref<18x128xbf16, #tpu.memory_space<vmem>>, vector<16x128xbf16>
    %c128_55 = arith.constant 128 : index
    %c0_56 = arith.constant 0 : index
    %71 = vector.load %arg6[%c128_55, %c0_56] : memref<384x128xbf16, #tpu.memory_space<vmem>>, vector<128x128xbf16>
    %cst_57 = arith.constant dense<0.000000e+00> : vector<16x128xf32>
    %72 = tpu.matmul %70, %71, %cst_57 {dimension_numbers = #tpu.dot_dimension_numbers<[1], [0], [0], [1], [0, 0, 1, 1], [], []>} : vector<16x128xbf16>, vector<128x128xbf16>, vector<16x128xf32> -> vector<16x128xf32>
    %73 = arith.addf %69, %72 : vector<16x128xf32>
    %c2_58 = arith.constant 2 : index
    %c0_59 = arith.constant 0 : index
    %74 = vector.load %arg12[%c2_58, %c0_59] : memref<18x128xbf16, #tpu.memory_space<vmem>>, vector<16x128xbf16>
    %c256_60 = arith.constant 256 : index
    %c0_61 = arith.constant 0 : index
    %75 = vector.load %arg6[%c256_60, %c0_61] : memref<384x128xbf16, #tpu.memory_space<vmem>>, vector<128x128xbf16>
    %cst_62 = arith.constant dense<0.000000e+00> : vector<16x128xf32>
    %76 = tpu.matmul %74, %75, %cst_62 {dimension_numbers = #tpu.dot_dimension_numbers<[1], [0], [0], [1], [0, 0, 1, 1], [], []>} : vector<16x128xbf16>, vector<128x128xbf16>, vector<16x128xf32> -> vector<16x128xf32>
    %77 = arith.addf %73, %76 : vector<16x128xf32>
    %c0_63 = arith.constant 0 : index
    %c0_64 = arith.constant 0 : index
    %78 = vector.load %arg7[%c0_63, %c0_64] : memref<1x128xf32, #tpu.memory_space<vmem>>, vector<1x128xf32>
    %79 = vector.broadcast %78 : vector<1x128xf32> to vector<16x128xf32>
    %80 = arith.addf %77, %79 : vector<16x128xf32>
    %cst_65 = arith.constant 0.000000e+00 : f32
    %81 = vector.broadcast %cst_65 : f32 to vector<16x128xf32>
    %82 = arith.maximumf %80, %81 : vector<16x128xf32>
    %c0_66 = arith.constant 0 : index
    %c0_67 = arith.constant 0 : index
    %83 = vector.load %arg8[%c0_66, %c0_67] : memref<128x128xbf16, #tpu.memory_space<vmem>>, vector<128x128xbf16>
    %cst_68 = arith.constant dense<0.000000e+00> : vector<16x128xf32>
    %84 = tpu.matmul %1, %83, %cst_68 {dimension_numbers = #tpu.dot_dimension_numbers<[1], [0], [0], [1], [0, 0, 1, 1], [], []>} : vector<16x128xbf16>, vector<128x128xbf16>, vector<16x128xf32> -> vector<16x128xf32>
    %c0_69 = arith.constant 0 : index
    %c0_70 = arith.constant 0 : index
    %85 = vector.load %arg9[%c0_69, %c0_70] : memref<1x128xf32, #tpu.memory_space<vmem>>, vector<1x128xf32>
    %86 = vector.broadcast %85 : vector<1x128xf32> to vector<16x128xf32>
    %87 = arith.addf %84, %86 : vector<16x128xf32>
    %88 = arith.addf %82, %87 : vector<16x128xf32>
    %89 = arith.truncf %88 : vector<16x128xf32> to vector<16x128xbf16>
    %c0_71 = arith.constant 0 : index
    %c0_72 = arith.constant 0 : index
    %c0_73 = arith.constant 0 : index
    %90 = vector.load %arg10[%c0_71, %c0_72, %c0_73] : memref<1x16x128xbf16, #tpu.memory_space<vmem>>, vector<1x16x128xbf16>
    %91 = vector.shape_cast %90 : vector<1x16x128xbf16> to vector<16x128xbf16>
    %92 = vector.shape_cast %89 : vector<16x128xbf16> to vector<1x16x128xbf16>
    tpu.vector_store %arg10[%c0_71, %c0_72, %c0_73], %92 {strides = array<i32>} : memref<1x16x128xbf16, #tpu.memory_space<vmem>>, vector<1x16x128xbf16>,
    return
  }
  func.func @transform_1(%arg0: i32, %arg1: i32) -> (i32, i32, i32) {
    %c0_i32 = arith.constant 0 : i32
    %c0_i32_0 = arith.constant 0 : i32
    return %arg0, %arg1, %c0_i32 : i32, i32, i32
  }
  func.func @transform_2(%arg0: i32, %arg1: i32) -> (i32, i32) {
    %c0_i32 = arith.constant 0 : i32
    %c0_i32_0 = arith.constant 0 : i32
    %c0_i32_1 = arith.constant 0 : i32
    return %c0_i32, %c0_i32_0 : i32, i32
  }
  func.func @transform_3(%arg0: i32, %arg1: i32) -> (i32, i32) {
    %c0_i32 = arith.constant 0 : i32
    %c0_i32_0 = arith.constant 0 : i32
    %c0_i32_1 = arith.constant 0 : i32
    return %c0_i32, %c0_i32_0 : i32, i32
  }
  func.func @transform_4(%arg0: i32, %arg1: i32) -> (i32, i32) {
    %c0_i32 = arith.constant 0 : i32
    %c0_i32_0 = arith.constant 0 : i32
    %c0_i32_1 = arith.constant 0 : i32
    return %c0_i32, %c0_i32_0 : i32, i32
  }
  func.func @transform_5(%arg0: i32, %arg1: i32) -> (i32, i32) {
    %c0_i32 = arith.constant 0 : i32
    %c0_i32_0 = arith.constant 0 : i32
    %c0_i32_1 = arith.constant 0 : i32
    return %c0_i32, %c0_i32_0 : i32, i32
  }
  func.func @transform_6(%arg0: i32, %arg1: i32) -> (i32, i32) {
    %c0_i32 = arith.constant 0 : i32
    %c0_i32_0 = arith.constant 0 : i32
    %c0_i32_1 = arith.constant 0 : i32
    return %c0_i32, %c0_i32_0 : i32, i32
  }
  func.func @transform_7(%arg0: i32, %arg1: i32) -> (i32, i32) {
    %c0_i32 = arith.constant 0 : i32
    %c0_i32_0 = arith.constant 0 : i32
    %c0_i32_1 = arith.constant 0 : i32
    return %c0_i32, %c0_i32_0 : i32, i32
  }
  func.func @transform_8(%arg0: i32, %arg1: i32) -> (i32, i32, i32) {
    %c0_i32 = arith.constant 0 : i32
    %c0_i32_0 = arith.constant 0 : i32
    return %arg0, %arg1, %c0_i32 : i32, i32, i32
  }
}

module attributes {stable_mosaic.version = 11 : i64} {
  func.func @kernel(%arg0: i32, %arg1: i32, %arg2: memref<2x16x128xbf16, #tpu.memory_space<any>>, %arg3: memref<1x16x128xbf16, #tpu.memory_space<vmem>>, %arg4: memref<384x128xbf16, #tpu.memory_space<vmem>>, %arg5: memref<1x128xf32, #tpu.memory_space<vmem>>, %arg6: memref<384x128xbf16, #tpu.memory_space<vmem>>, %arg7: memref<1x128xf32, #tpu.memory_space<vmem>>, %arg8: memref<1x16x128xbf16, #tpu.memory_space<vmem>>, %arg9: memref<24x128xbf16, #tpu.memory_space<vmem>>, %arg10: memref<20x128xbf16, #tpu.memory_space<vmem>>, %arg11: memref<16x128xbf16, #tpu.memory_space<vmem>>, %arg12: memref<16x128xbf16, #tpu.memory_space<vmem>>, %arg13: memref<2x!tpu.dma_semaphore, #tpu.memory_space<semaphore_mem>>) attributes {dimension_semantics = [#tpu.dimension_semantics<parallel>, #tpu.dimension_semantics<parallel>], iteration_bounds = array<i64: 2, 1>, scalar_prefetch = 0 : i64, scratch_operands = 5 : i64, tpu.core_type = #tpu.core_type<tc>, window_params = [{}, {transform_indices = @transform_1, window_bounds = array<i64: 1, 16, 128>}, {pipeline_mode = #tpu.pipeline_mode<synchronous>, transform_indices = @transform_2, window_bounds = array<i64: 384, 128>}, {pipeline_mode = #tpu.pipeline_mode<synchronous>, transform_indices = @transform_3, window_bounds = array<i64: 1, 128>}, {pipeline_mode = #tpu.pipeline_mode<synchronous>, transform_indices = @transform_4, window_bounds = array<i64: 384, 128>}, {pipeline_mode = #tpu.pipeline_mode<synchronous>, transform_indices = @transform_5, window_bounds = array<i64: 1, 128>}, {transform_indices = @transform_6, window_bounds = array<i64: 1, 16, 128>}]} {
    %c0 = arith.constant 0 : index
    %c0_0 = arith.constant 0 : index
    %c0_1 = arith.constant 0 : index
    %0 = vector.load %arg3[%c0, %c0_0, %c0_1] : memref<1x16x128xbf16, #tpu.memory_space<vmem>>, vector<1x16x128xbf16>
    %1 = vector.shape_cast %0 : vector<1x16x128xbf16> to vector<16x128xbf16>
    %c1_i32 = arith.constant 1 : i32
    %2 = arith.addi %arg1, %c1_i32 : i32
    %c1_i32_2 = arith.constant 1 : i32
    %3 = arith.subi %2, %c1_i32_2 : i32
    %c1_i32_3 = arith.constant 1 : i32
    %c0_i32 = arith.constant 0 : i32
    %4 = arith.cmpi eq, %c1_i32_3, %c0_i32 : i32
    %c1_i32_4 = arith.constant 1 : i32
    %5 = arith.select %4, %c1_i32_4, %c1_i32_3 : i32
    %6 = arith.remsi %3, %5 : i32
    %c0_i32_5 = arith.constant 0 : i32
    %7 = arith.cmpi ne, %6, %c0_i32_5 : i32
    %c0_i32_6 = arith.constant 0 : i32
    %8 = arith.cmpi slt, %6, %c0_i32_6 : i32
    %c0_i32_7 = arith.constant 0 : i32
    %9 = arith.cmpi slt, %5, %c0_i32_7 : i32
    %10 = arith.xori %8, %9 : i1
    %11 = arith.andi %10, %7 : i1
    %12 = arith.addi %6, %5 : i32
    %13 = arith.select %11, %12, %6 : i32
    %c16_i32 = arith.constant 16 : i32
    %14 = arith.muli %13, %c16_i32 : i32
    %c0_i32_8 = arith.constant 0 : i32
    %15 = arith.addi %14, %c0_i32_8 : i32
    %c0_i32_9 = arith.constant 0 : i32
    %c0_i32_10 = arith.constant 0 : i32
    %16 = tpu.memref_slice %arg2[%arg0, %15, %c0_i32_10] : memref<2x16x128xbf16, #tpu.memory_space<any>> -> memref<1x16x128xbf16, #tpu.memory_space<any>>
    %17 = tpu.memref_squeeze %16 : memref<1x16x128xbf16, #tpu.memory_space<any>> -> memref<16x128xbf16, #tpu.memory_space<any>>
    %18 = tpu.memref_slice %arg13[%c0_i32_9] : memref<2x!tpu.dma_semaphore, #tpu.memory_space<semaphore_mem>> -> memref<1x!tpu.dma_semaphore, #tpu.memory_space<semaphore_mem>>
    %19 = tpu.memref_squeeze %18 : memref<1x!tpu.dma_semaphore, #tpu.memory_space<semaphore_mem>> -> memref<!tpu.dma_semaphore, #tpu.memory_space<semaphore_mem>>
    tpu.enqueue_dma source(%17 : memref<16x128xbf16, #tpu.memory_space<any>>) target(%arg11 : memref<16x128xbf16, #tpu.memory_space<vmem>>) target_semaphore(%19 : memref<!tpu.dma_semaphore, #tpu.memory_space<semaphore_mem>>)
    %c1_i32_11 = arith.constant 1 : i32
    %20 = arith.addi %arg1, %c1_i32_11 : i32
    %c1_i32_12 = arith.constant 1 : i32
    %c0_i32_13 = arith.constant 0 : i32
    %21 = arith.cmpi eq, %c1_i32_12, %c0_i32_13 : i32
    %c1_i32_14 = arith.constant 1 : i32
    %22 = arith.select %21, %c1_i32_14, %c1_i32_12 : i32
    %23 = arith.remsi %20, %22 : i32
    %c0_i32_15 = arith.constant 0 : i32
    %24 = arith.cmpi ne, %23, %c0_i32_15 : i32
    %c0_i32_16 = arith.constant 0 : i32
    %25 = arith.cmpi slt, %23, %c0_i32_16 : i32
    %c0_i32_17 = arith.constant 0 : i32
    %26 = arith.cmpi slt, %22, %c0_i32_17 : i32
    %27 = arith.xori %25, %26 : i1
    %28 = arith.andi %27, %24 : i1
    %29 = arith.addi %23, %22 : i32
    %30 = arith.select %28, %29, %23 : i32
    %c16_i32_18 = arith.constant 16 : i32
    %31 = arith.muli %30, %c16_i32_18 : i32
    %c1_i32_19 = arith.constant 1 : i32
    %c0_i32_20 = arith.constant 0 : i32
    %32 = tpu.memref_slice %arg2[%arg0, %31, %c0_i32_20] : memref<2x16x128xbf16, #tpu.memory_space<any>> -> memref<1x16x128xbf16, #tpu.memory_space<any>>
    %33 = tpu.memref_squeeze %32 : memref<1x16x128xbf16, #tpu.memory_space<any>> -> memref<16x128xbf16, #tpu.memory_space<any>>
    %34 = tpu.memref_slice %arg13[%c1_i32_19] : memref<2x!tpu.dma_semaphore, #tpu.memory_space<semaphore_mem>> -> memref<1x!tpu.dma_semaphore, #tpu.memory_space<semaphore_mem>>
    %35 = tpu.memref_squeeze %34 : memref<1x!tpu.dma_semaphore, #tpu.memory_space<semaphore_mem>> -> memref<!tpu.dma_semaphore, #tpu.memory_space<semaphore_mem>>
    tpu.enqueue_dma source(%33 : memref<16x128xbf16, #tpu.memory_space<any>>) target(%arg12 : memref<16x128xbf16, #tpu.memory_space<vmem>>) target_semaphore(%35 : memref<!tpu.dma_semaphore, #tpu.memory_space<semaphore_mem>>)
    %c4 = arith.constant 4 : index
    %c0_21 = arith.constant 0 : index
    %36 = vector.load %arg9[%c4, %c0_21] : memref<24x128xbf16, #tpu.memory_space<vmem>>, vector<16x128xbf16>
    tpu.vector_store %arg9[%c4, %c0_21], %1 {strides = array<i32>} : memref<24x128xbf16, #tpu.memory_space<vmem>>, vector<16x128xbf16>,
    %c0_i32_22 = arith.constant 0 : i32
    %c0_i32_23 = arith.constant 0 : i32
    %37 = tpu.memref_slice %arg2[%arg0, %15, %c0_i32_23] : memref<2x16x128xbf16, #tpu.memory_space<any>> -> memref<1x16x128xbf16, #tpu.memory_space<any>>
    %38 = tpu.memref_squeeze %37 : memref<1x16x128xbf16, #tpu.memory_space<any>> -> memref<16x128xbf16, #tpu.memory_space<any>>
    %39 = tpu.memref_slice %arg13[%c0_i32_22] : memref<2x!tpu.dma_semaphore, #tpu.memory_space<semaphore_mem>> -> memref<1x!tpu.dma_semaphore, #tpu.memory_space<semaphore_mem>>
    %40 = tpu.memref_squeeze %39 : memref<1x!tpu.dma_semaphore, #tpu.memory_space<semaphore_mem>> -> memref<!tpu.dma_semaphore, #tpu.memory_space<semaphore_mem>>
    tpu.wait_dma2 semaphore(%40 : memref<!tpu.dma_semaphore, #tpu.memory_space<semaphore_mem>>) src(%38 : memref<16x128xbf16, #tpu.memory_space<any>>) dst(%arg11 : memref<16x128xbf16, #tpu.memory_space<vmem>>)
    %c12 = arith.constant 12 : index
    %c0_24 = arith.constant 0 : index
    %41 = vector.load %arg11[%c12, %c0_24] : memref<16x128xbf16, #tpu.memory_space<vmem>>, vector<4x128xbf16>
    %c0_25 = arith.constant 0 : index
    %c0_26 = arith.constant 0 : index
    %42 = vector.load %arg9[%c0_25, %c0_26] : memref<24x128xbf16, #tpu.memory_space<vmem>>, vector<4x128xbf16>
    tpu.vector_store %arg9[%c0_25, %c0_26], %41 {strides = array<i32>} : memref<24x128xbf16, #tpu.memory_space<vmem>>, vector<4x128xbf16>,
    %c1_i32_27 = arith.constant 1 : i32
    %c0_i32_28 = arith.constant 0 : i32
    %43 = tpu.memref_slice %arg2[%arg0, %31, %c0_i32_28] : memref<2x16x128xbf16, #tpu.memory_space<any>> -> memref<1x16x128xbf16, #tpu.memory_space<any>>
    %44 = tpu.memref_squeeze %43 : memref<1x16x128xbf16, #tpu.memory_space<any>> -> memref<16x128xbf16, #tpu.memory_space<any>>
    %45 = tpu.memref_slice %arg13[%c1_i32_27] : memref<2x!tpu.dma_semaphore, #tpu.memory_space<semaphore_mem>> -> memref<1x!tpu.dma_semaphore, #tpu.memory_space<semaphore_mem>>
    %46 = tpu.memref_squeeze %45 : memref<1x!tpu.dma_semaphore, #tpu.memory_space<semaphore_mem>> -> memref<!tpu.dma_semaphore, #tpu.memory_space<semaphore_mem>>
    tpu.wait_dma2 semaphore(%46 : memref<!tpu.dma_semaphore, #tpu.memory_space<semaphore_mem>>) src(%44 : memref<16x128xbf16, #tpu.memory_space<any>>) dst(%arg12 : memref<16x128xbf16, #tpu.memory_space<vmem>>)
    %c0_29 = arith.constant 0 : index
    %c0_30 = arith.constant 0 : index
    %47 = vector.load %arg12[%c0_29, %c0_30] : memref<16x128xbf16, #tpu.memory_space<vmem>>, vector<4x128xbf16>
    %c20 = arith.constant 20 : index
    %c0_31 = arith.constant 0 : index
    %48 = vector.load %arg9[%c20, %c0_31] : memref<24x128xbf16, #tpu.memory_space<vmem>>, vector<4x128xbf16>
    tpu.vector_store %arg9[%c20, %c0_31], %47 {strides = array<i32>} : memref<24x128xbf16, #tpu.memory_space<vmem>>, vector<4x128xbf16>,
    %c0_32 = arith.constant 0 : index
    %c0_33 = arith.constant 0 : index
    %49 = vector.load %arg9[%c0_32, %c0_33] : memref<24x128xbf16, #tpu.memory_space<vmem>>, vector<20x128xbf16>
    %c0_34 = arith.constant 0 : index
    %c0_35 = arith.constant 0 : index
    %50 = vector.load %arg4[%c0_34, %c0_35] : memref<384x128xbf16, #tpu.memory_space<vmem>>, vector<128x128xbf16>
    %cst = arith.constant dense<0.000000e+00> : vector<20x128xf32>
    %51 = tpu.matmul %49, %50, %cst {dimension_numbers = #tpu.dot_dimension_numbers<[1], [0], [0], [1], [0, 0, 1, 1], [], []>} : vector<20x128xbf16>, vector<128x128xbf16>, vector<20x128xf32> -> vector<20x128xf32>
    %c2 = arith.constant 2 : index
    %c0_36 = arith.constant 0 : index
    %52 = vector.load %arg9[%c2, %c0_36] : memref<24x128xbf16, #tpu.memory_space<vmem>>, vector<20x128xbf16>
    %c128 = arith.constant 128 : index
    %c0_37 = arith.constant 0 : index
    %53 = vector.load %arg4[%c128, %c0_37] : memref<384x128xbf16, #tpu.memory_space<vmem>>, vector<128x128xbf16>
    %cst_38 = arith.constant dense<0.000000e+00> : vector<20x128xf32>
    %54 = tpu.matmul %52, %53, %cst_38 {dimension_numbers = #tpu.dot_dimension_numbers<[1], [0], [0], [1], [0, 0, 1, 1], [], []>} : vector<20x128xbf16>, vector<128x128xbf16>, vector<20x128xf32> -> vector<20x128xf32>
    %55 = arith.addf %51, %54 : vector<20x128xf32>
    %c4_39 = arith.constant 4 : index
    %c0_40 = arith.constant 0 : index
    %56 = vector.load %arg9[%c4_39, %c0_40] : memref<24x128xbf16, #tpu.memory_space<vmem>>, vector<20x128xbf16>
    %c256 = arith.constant 256 : index
    %c0_41 = arith.constant 0 : index
    %57 = vector.load %arg4[%c256, %c0_41] : memref<384x128xbf16, #tpu.memory_space<vmem>>, vector<128x128xbf16>
    %cst_42 = arith.constant dense<0.000000e+00> : vector<20x128xf32>
    %58 = tpu.matmul %56, %57, %cst_42 {dimension_numbers = #tpu.dot_dimension_numbers<[1], [0], [0], [1], [0, 0, 1, 1], [], []>} : vector<20x128xbf16>, vector<128x128xbf16>, vector<20x128xf32> -> vector<20x128xf32>
    %59 = arith.addf %55, %58 : vector<20x128xf32>
    %c0_43 = arith.constant 0 : index
    %c0_44 = arith.constant 0 : index
    %60 = vector.load %arg5[%c0_43, %c0_44] : memref<1x128xf32, #tpu.memory_space<vmem>>, vector<1x128xf32>
    %61 = vector.broadcast %60 : vector<1x128xf32> to vector<20x128xf32>
    %62 = arith.addf %59, %61 : vector<20x128xf32>
    %cst_45 = arith.constant 0.000000e+00 : f32
    %63 = vector.broadcast %cst_45 : f32 to vector<20x128xf32>
    %64 = arith.maximumf %62, %63 : vector<20x128xf32>
    %65 = arith.truncf %64 : vector<20x128xf32> to vector<20x128xbf16>
    %c0_46 = arith.constant 0 : index
    %c0_47 = arith.constant 0 : index
    %66 = vector.load %arg10[%c0_46, %c0_47] : memref<20x128xbf16, #tpu.memory_space<vmem>>, vector<20x128xbf16>
    tpu.vector_store %arg10[%c0_46, %c0_47], %65 {strides = array<i32>} : memref<20x128xbf16, #tpu.memory_space<vmem>>, vector<20x128xbf16>,
    %c0_48 = arith.constant 0 : index
    %c0_49 = arith.constant 0 : index
    %67 = vector.load %arg10[%c0_48, %c0_49] : memref<20x128xbf16, #tpu.memory_space<vmem>>, vector<16x128xbf16>
    %c0_50 = arith.constant 0 : index
    %c0_51 = arith.constant 0 : index
    %68 = vector.load %arg6[%c0_50, %c0_51] : memref<384x128xbf16, #tpu.memory_space<vmem>>, vector<128x128xbf16>
    %cst_52 = arith.constant dense<0.000000e+00> : vector<16x128xf32>
    %69 = tpu.matmul %67, %68, %cst_52 {dimension_numbers = #tpu.dot_dimension_numbers<[1], [0], [0], [1], [0, 0, 1, 1], [], []>} : vector<16x128xbf16>, vector<128x128xbf16>, vector<16x128xf32> -> vector<16x128xf32>
    %c2_53 = arith.constant 2 : index
    %c0_54 = arith.constant 0 : index
    %70 = vector.load %arg10[%c2_53, %c0_54] : memref<20x128xbf16, #tpu.memory_space<vmem>>, vector<16x128xbf16>
    %c128_55 = arith.constant 128 : index
    %c0_56 = arith.constant 0 : index
    %71 = vector.load %arg6[%c128_55, %c0_56] : memref<384x128xbf16, #tpu.memory_space<vmem>>, vector<128x128xbf16>
    %cst_57 = arith.constant dense<0.000000e+00> : vector<16x128xf32>
    %72 = tpu.matmul %70, %71, %cst_57 {dimension_numbers = #tpu.dot_dimension_numbers<[1], [0], [0], [1], [0, 0, 1, 1], [], []>} : vector<16x128xbf16>, vector<128x128xbf16>, vector<16x128xf32> -> vector<16x128xf32>
    %73 = arith.addf %69, %72 : vector<16x128xf32>
    %c4_58 = arith.constant 4 : index
    %c0_59 = arith.constant 0 : index
    %74 = vector.load %arg10[%c4_58, %c0_59] : memref<20x128xbf16, #tpu.memory_space<vmem>>, vector<16x128xbf16>
    %c256_60 = arith.constant 256 : index
    %c0_61 = arith.constant 0 : index
    %75 = vector.load %arg6[%c256_60, %c0_61] : memref<384x128xbf16, #tpu.memory_space<vmem>>, vector<128x128xbf16>
    %cst_62 = arith.constant dense<0.000000e+00> : vector<16x128xf32>
    %76 = tpu.matmul %74, %75, %cst_62 {dimension_numbers = #tpu.dot_dimension_numbers<[1], [0], [0], [1], [0, 0, 1, 1], [], []>} : vector<16x128xbf16>, vector<128x128xbf16>, vector<16x128xf32> -> vector<16x128xf32>
    %77 = arith.addf %73, %76 : vector<16x128xf32>
    %c0_63 = arith.constant 0 : index
    %c0_64 = arith.constant 0 : index
    %78 = vector.load %arg7[%c0_63, %c0_64] : memref<1x128xf32, #tpu.memory_space<vmem>>, vector<1x128xf32>
    %79 = vector.broadcast %78 : vector<1x128xf32> to vector<16x128xf32>
    %80 = arith.addf %77, %79 : vector<16x128xf32>
    %cst_65 = arith.constant 0.000000e+00 : f32
    %81 = vector.broadcast %cst_65 : f32 to vector<16x128xf32>
    %82 = arith.maximumf %80, %81 : vector<16x128xf32>
    %83 = arith.extf %1 : vector<16x128xbf16> to vector<16x128xf32>
    %84 = arith.addf %82, %83 : vector<16x128xf32>
    %85 = arith.truncf %84 : vector<16x128xf32> to vector<16x128xbf16>
    %c0_66 = arith.constant 0 : index
    %c0_67 = arith.constant 0 : index
    %c0_68 = arith.constant 0 : index
    %86 = vector.load %arg8[%c0_66, %c0_67, %c0_68] : memref<1x16x128xbf16, #tpu.memory_space<vmem>>, vector<1x16x128xbf16>
    %87 = vector.shape_cast %86 : vector<1x16x128xbf16> to vector<16x128xbf16>
    %88 = vector.shape_cast %85 : vector<16x128xbf16> to vector<1x16x128xbf16>
    tpu.vector_store %arg8[%c0_66, %c0_67, %c0_68], %88 {strides = array<i32>} : memref<1x16x128xbf16, #tpu.memory_space<vmem>>, vector<1x16x128xbf16>,
    return
  }
  func.func @transform_1(%arg0: i32, %arg1: i32) -> (i32, i32, i32) {
    %c0_i32 = arith.constant 0 : i32
    %c0_i32_0 = arith.constant 0 : i32
    return %arg0, %arg1, %c0_i32 : i32, i32, i32
  }
  func.func @transform_2(%arg0: i32, %arg1: i32) -> (i32, i32) {
    %c0_i32 = arith.constant 0 : i32
    %c0_i32_0 = arith.constant 0 : i32
    %c0_i32_1 = arith.constant 0 : i32
    return %c0_i32, %c0_i32_0 : i32, i32
  }
  func.func @transform_3(%arg0: i32, %arg1: i32) -> (i32, i32) {
    %c0_i32 = arith.constant 0 : i32
    %c0_i32_0 = arith.constant 0 : i32
    %c0_i32_1 = arith.constant 0 : i32
    return %c0_i32, %c0_i32_0 : i32, i32
  }
  func.func @transform_4(%arg0: i32, %arg1: i32) -> (i32, i32) {
    %c0_i32 = arith.constant 0 : i32
    %c0_i32_0 = arith.constant 0 : i32
    %c0_i32_1 = arith.constant 0 : i32
    return %c0_i32, %c0_i32_0 : i32, i32
  }
  func.func @transform_5(%arg0: i32, %arg1: i32) -> (i32, i32) {
    %c0_i32 = arith.constant 0 : i32
    %c0_i32_0 = arith.constant 0 : i32
    %c0_i32_1 = arith.constant 0 : i32
    return %c0_i32, %c0_i32_0 : i32, i32
  }
  func.func @transform_6(%arg0: i32, %arg1: i32) -> (i32, i32, i32) {
    %c0_i32 = arith.constant 0 : i32
    %c0_i32_0 = arith.constant 0 : i32
    return %arg0, %arg1, %c0_i32 : i32, i32, i32
  }
}

</mosaic_0001>

<llo_original>
// kernel: _lambda_.2
$region0: #{_lambda_.2}
  #allocation0 [shape = 'u32[]', space=smem, size = 0x4, offset = 0x4, fixed_abs, tag = 'smem constant byte address 0x4 - core index']
  #allocation1 [shape = 'u32[72,128]{1,0:T(1,128)}', space=vmem, size = 0x9000, scoped, tag = 'internal scratch']
  #allocation2 [shape = 'bf16[20,128]{1,0:T(8,128)(2,1)}', space=vmem, size = 0x1800, scoped, tag = 'scratch operand']
  #allocation3 [shape = 'bf16[18,128]{1,0:T(8,128)(2,1)}', space=vmem, size = 0x1800, scoped, tag = 'scratch operand']
  #allocation4 [shape = 'bf16[16,128]{1,0:T(8,128)(2,1)}', space=vmem, size = 0x1000, scoped, tag = 'scratch operand']
  #allocation5 [shape = 'bf16[16,128]{1,0:T(8,128)(2,1)}', space=vmem, size = 0x1000, scoped, tag = 'scratch operand']
  #allocation6 [shape = 's32[2]{0}', space=sflag, size = 0x8, scoped, tag = 'scratch operand']
  #allocation11 [shape = 's32[]', space=sflag, size = 0x4, offset = 0, fixed_abs, tag = 'sflag constant byte address 0x0 - dummy sync flag']
  #allocation12 [shape = 's32[]', space=sflag, size = 0x4, offset = 0, fixed_abs, tag = 'sflag constant byte address 0x0 - dummy sync flag']
  %s0 = inlined_call_operand.vmem [shape: bf16[2,16,128], index: 0, kind: input, shape index: {}, may-alias: {0,1}]
  %s1 = inlined_call_operand.vmem [shape: bf16[2,16,128], index: 1, kind: input, shape index: {}, may-alias: {0,1}]
  %s2 = inlined_call_operand.hbm [shape: bf16[384,128], index: 2, kind: input, shape index: {}]
  %s3 = inlined_call_operand.vmem [shape: f32[1,128], index: 3, kind: input, shape index: {}]
  %s4 = inlined_call_operand.hbm [shape: bf16[384,128], index: 4, kind: input, shape index: {}]
  %s5 = inlined_call_operand.vmem [shape: f32[1,128], index: 5, kind: input, shape index: {}]
  %s6 = inlined_call_operand.vmem [shape: bf16[128,128], index: 6, kind: input, shape index: {}]
  %s7 = inlined_call_operand.vmem [shape: f32[1,128], index: 7, kind: input, shape index: {}]
  %s8 = inlined_call_operand.vmem [shape: bf16[2,16,128], index: 8, kind: output, shape index: {}]
  %s9 = sld [smem:[#allocation0]]
  $region137: #{_lambda_.2} parent=0
    _
  %s11 = ssub.s32 1, %s9
  %s12 = scalar_select 0, %s11, %s9
  $region1: #{_lambda_.2} parent=0
    #allocation7 [shape = 'u8[98304]{0}', space=vmem, size = 0x18000, scoped, tag = 'input window, operand 2, single buffered']
    #allocation8 [shape = 's32[2]{0}', space=sflag, size = 0x8, scoped, tag = 'scoped memory for _lambda_.2']
    #allocation9 [shape = 'u8[98304]{0}', space=vmem, size = 0x18000, scoped, tag = 'input window, operand 4, single buffered']
    #allocation10 [shape = 's32[1]{0}', space=sflag, size = 0x4, scoped, tag = 'scoped memory for _lambda_.2']
    %13 = vsyncpa [#allocation8], 0
    %14 = vsyncpa [#allocation10], 0
    loop: start=0, step=1, limit=4
    $region2: #{_lambda_.2} parent=1 // loop_pre_header
      _
    $region3: #{_lambda_.2} parent=1 // loop_header
      %s16 = sphi 0, %s20
      %p17 = scmp.ge.s32.totalorder %s16, 4
      %s23 = sphi 0, %s35
      %s24 = sphi 0, %s31
      %s25 = sphi 0, %s23
      %s26 = sphi 0, %s24
      %s27 = sphi 0, %s25
      %s28 = sphi 0, %s26
      %s40 = sphi 0, %s42
      %s43 = sphi 0, %s40
      %s44 = sphi 0, %s43
      %s60 = sphi 0, %s44
      %s64 = sphi 0, %s64
      %s66 = sphi 0, %s64
      %s67 = sphi 0, %s66
      %s81 = sphi 0, %s67
      %s85 = sphi 0, %s85
      %s87 = sphi 0, %s85
      %s88 = sphi 0, %s87
      %s102 = sphi 0, %s88
      %s106 = sphi 0, %s106
      %s108 = sphi 0, %s106
      %s109 = sphi 0, %s108
      %s123 = sphi 0, %s109
      %s127 = sphi 0, %s127
      %s129 = sphi 0, %s127
      %s130 = sphi 0, %s129
      %s144 = sphi 0, %s130
      %s148 = sphi 0, %s148
      %s150 = sphi 0, %s148
      %s151 = sphi 0, %s150
      %s165 = sphi 0, %s151
      %s169 = sphi 0, %s169
      %s171 = sphi 0, %s169
      %s172 = sphi 0, %s171
      %s186 = sphi 0, %s172
      %s194 = sphi 0, %s196
      %s197 = sphi 0, %s194
      %s198 = sphi 0, %s197
      %s214 = sphi 0, %s198
    $region4: #{_lambda_.2} parent=1 // loop_header_branch
      %19 = sbr.rel (%p17) target = $region8
    $region5: #{_lambda_.2} parent=1 // loop_body
      %s21 = ssub.s32 %s16, 1
      %s22 = ssub.s32 %s16, 2
      %s29 = sadd.s32 1, %s24
      %p30 = scmp.ge.s32.totalorder %s29, 1
      %s31 = scalar_select %p30, 0, %s29
      %s32 = sadd.s32 1, %s23
      %s33 = scalar_select %p30, %s32, %s23
      %p34 = scmp.ge.s32.totalorder %s33, 2
      %s35 = scalar_select %p34, 0, %s33
      %s36 = ssub.s32 %s23, %s35
      %s37 = ssub.s32 %s24, %s31
      %s38 = sor.u32 %s36, %s37
      %p39 = scmp.eq.s32.totalorder %s38, 0
      %s41 = sadd.s32 %s40, 1
      %s42 = scalar_select %p39, %s40, %s41
      %p45 = pneg %p39
      %p46 = scmp.eq.s32.totalorder %s16, 1
      %p47 = por %p45, %p46
      %p48 = scmp.ne.s32.totalorder %s40, %s43
      %p49 = scmp.eq.s32.totalorder %s16, 0
      %p50 = por %p48, %p49
      %p51 = scmp.ne.s32.totalorder %s40, %s43
      %p52 = scmp.eq.s32.totalorder %s21, 1
      %p53 = por %p51, %p52
      %p54 = scmp.ne.s32.totalorder %s43, %s44
      %p55 = scmp.eq.s32.totalorder %s21, 0
      %p56 = por %p54, %p55
      %p57 = scmp.ne.s32.totalorder %s43, %s44
      %p58 = scmp.eq.s32.totalorder %s22, 1
      %p59 = por %p57, %p58
      %p61 = scmp.ne.s32.totalorder %s44, %s60
      %p62 = scmp.eq.s32.totalorder %s22, 0
      %p63 = por %p61, %p62
      %s65 = sadd.s32 %s64, 1
      %p68 = scmp.eq.s32.totalorder %s16, 1
      %p69 = scmp.ne.s32.totalorder %s64, %s66
      %p70 = scmp.eq.s32.totalorder %s16, 0
      %p71 = por %p69, %p70
      %p72 = scmp.ne.s32.totalorder %s64, %s66
      %p73 = scmp.eq.s32.totalorder %s21, 1
      %p74 = por %p72, %p73
      %p75 = scmp.ne.s32.totalorder %s66, %s67
      %p76 = scmp.eq.s32.totalorder %s21, 0
      %p77 = por %p75, %p76
      %p78 = scmp.ne.s32.totalorder %s66, %s67
      %p79 = scmp.eq.s32.totalorder %s22, 1
      %p80 = por %p78, %p79
      %p82 = scmp.ne.s32.totalorder %s67, %s81
      %p83 = scmp.eq.s32.totalorder %s22, 0
      %p84 = por %p82, %p83
      %s86 = sadd.s32 %s85, 1
      %p89 = scmp.eq.s32.totalorder %s16, 1
      %p90 = scmp.ne.s32.totalorder %s85, %s87
      %p91 = scmp.eq.s32.totalorder %s16, 0
      %p92 = por %p90, %p91
      %p93 = scmp.ne.s32.totalorder %s85, %s87
      %p94 = scmp.eq.s32.totalorder %s21, 1
      %p95 = por %p93, %p94
      %p96 = scmp.ne.s32.totalorder %s87, %s88
      %p97 = scmp.eq.s32.totalorder %s21, 0
      %p98 = por %p96, %p97
      %p99 = scmp.ne.s32.totalorder %s87, %s88
      %p100 = scmp.eq.s32.totalorder %s22, 1
      %p101 = por %p99, %p100
      %p103 = scmp.ne.s32.totalorder %s88, %s102
      %p104 = scmp.eq.s32.totalorder %s22, 0
      %p105 = por %p103, %p104
      %s107 = sadd.s32 %s106, 1
      %p110 = scmp.eq.s32.totalorder %s16, 1
      %p111 = scmp.ne.s32.totalorder %s106, %s108
      %p112 = scmp.eq.s32.totalorder %s16, 0
      %p113 = por %p111, %p112
      %p114 = scmp.ne.s32.totalorder %s106, %s108
      %p115 = scmp.eq.s32.totalorder %s21, 1
      %p116 = por %p114, %p115
      %p117 = scmp.ne.s32.totalorder %s108, %s109
      %p118 = scmp.eq.s32.totalorder %s21, 0
      %p119 = por %p117, %p118
      %p120 = scmp.ne.s32.totalorder %s108, %s109
      %p121 = scmp.eq.s32.totalorder %s22, 1
      %p122 = por %p120, %p121
      %p124 = scmp.ne.s32.totalorder %s109, %s123
      %p125 = scmp.eq.s32.totalorder %s22, 0
      %p126 = por %p124, %p125
      %s128 = sadd.s32 %s127, 1
      %p131 = scmp.eq.s32.totalorder %s16, 1
      %p132 = scmp.ne.s32.totalorder %s127, %s129
      %p133 = scmp.eq.s32.totalorder %s16, 0
      %p134 = por %p132, %p133
      %p135 = scmp.ne.s32.totalorder %s127, %s129
      %p136 = scmp.eq.s32.totalorder %s21, 1
      %p137 = por %p135, %p136
      %p138 = scmp.ne.s32.totalorder %s129, %s130
      %p139 = scmp.eq.s32.totalorder %s21, 0
      %p140 = por %p138, %p139
      %p141 = scmp.ne.s32.totalorder %s129, %s130
      %p142 = scmp.eq.s32.totalorder %s22, 1
      %p143 = por %p141, %p142
      %p145 = scmp.ne.s32.totalorder %s130, %s144
      %p146 = scmp.eq.s32.totalorder %s22, 0
      %p147 = por %p145, %p146
      %s149 = sadd.s32 %s148, 1
      %p152 = scmp.eq.s32.totalorder %s16, 1
      %p153 = scmp.ne.s32.totalorder %s148, %s150
      %p154 = scmp.eq.s32.totalorder %s16, 0
      %p155 = por %p153, %p154
      %p156 = scmp.ne.s32.totalorder %s148, %s150
      %p157 = scmp.eq.s32.totalorder %s21, 1
      %p158 = por %p156, %p157
      %p159 = scmp.ne.s32.totalorder %s150, %s151
      %p160 = scmp.eq.s32.totalorder %s21, 0
      %p161 = por %p159, %p160
      %p162 = scmp.ne.s32.totalorder %s150, %s151
      %p163 = scmp.eq.s32.totalorder %s22, 1
      %p164 = por %p162, %p163
      %p166 = scmp.ne.s32.totalorder %s151, %s165
      %p167 = scmp.eq.s32.totalorder %s22, 0
      %p168 = por %p166, %p167
      %s170 = sadd.s32 %s169, 1
      %p173 = scmp.eq.s32.totalorder %s16, 1
      %p174 = scmp.ne.s32.totalorder %s169, %s171
      %p175 = scmp.eq.s32.totalorder %s16, 0
      %p176 = por %p174, %p175
      %p177 = scmp.ne.s32.totalorder %s169, %s171
      %p178 = scmp.eq.s32.totalorder %s21, 1
      %p179 = por %p177, %p178
      %p180 = scmp.ne.s32.totalorder %s171, %s172
      %p181 = scmp.eq.s32.totalorder %s21, 0
      %p182 = por %p180, %p181
      %p183 = scmp.ne.s32.totalorder %s171, %s172
      %p184 = scmp.eq.s32.totalorder %s22, 1
      %p185 = por %p183, %p184
      %p187 = scmp.ne.s32.totalorder %s172, %s186
      %p188 = scmp.eq.s32.totalorder %s22, 0
      %p189 = por %p187, %p188
      %s190 = ssub.s32 %s23, %s35
      %s191 = ssub.s32 %s24, %s31
      %s192 = sor.u32 %s190, %s191
      %p193 = scmp.eq.s32.totalorder %s192, 0
      %s195 = sadd.s32 %s194, 1
      %s196 = scalar_select %p193, %s194, %s195
      %p199 = pneg %p193
      %p200 = scmp.eq.s32.totalorder %s16, 1
      %p201 = por %p199, %p200
      %p202 = scmp.ne.s32.totalorder %s194, %s197
      %p203 = scmp.eq.s32.totalorder %s16, 0
      %p204 = por %p202, %p203
      %p205 = scmp.ne.s32.totalorder %s194, %s197
      %p206 = scmp.eq.s32.totalorder %s21, 1
      %p207 = por %p205, %p206
      %p208 = scmp.ne.s32.totalorder %s197, %s198
      %p209 = scmp.eq.s32.totalorder %s21, 0
      %p210 = por %p208, %p209
      %p211 = scmp.ne.s32.totalorder %s197, %s198
      %p212 = scmp.eq.s32.totalorder %s22, 1
      %p213 = por %p211, %p212
      %p215 = scmp.ne.s32.totalorder %s198, %s214
      %p216 = scmp.eq.s32.totalorder %s22, 0
      %p217 = por %p215, %p216
      %p218 = scmp.le.s32.totalorder 1, %s16
      %p219 = scmp.lt.s32.totalorder %s16, 3
      %p220 = pnand %p218, %p219
      %p221 = pneg %p220
      // Predicated region
      $region9: #{_lambda_.2} parent=5 // pred_check
        _
      $region10: #{_lambda_.2} parent=5 // pred_check_branch
        %223 = sbr.rel (%p220) target = $region12
      $region11: #{_lambda_.2} parent=5 // pred_region
        %s224 = ssub.s32 %s16, 1
        // Predicated region
        $region13: #{_lambda_.2} parent=11 // pred_check
          %p225 = pneg %p77
        $region14: #{_lambda_.2} parent=11 // pred_check_branch
          %227 = sbr.rel (%p225) target = $region16
        $region15: #{_lambda_.2} parent=11 // pred_region
          %229 = vsyncadd [#allocation8], 0
          %s230 = sshll.u32 %s2, 4
          %s231 = int_to_ptr.hbm [resolvable:$true] %s230
          %s232 = sshll.u32 [#allocation7], 4
          %s233 = int_to_ptr.vmem [resolvable:$true] %s232
          %238 = dma.hbm_to_vmem [thread:$0]  %s231, 3072, %s233, [#allocation8], 64, 64, 4
        $region16: #{_lambda_.2} parent=11 // pred_fallthru
          _
        // Predicated region
        $region17: #{_lambda_.2} parent=11 // pred_check
          %p239 = pneg %p98
        $region18: #{_lambda_.2} parent=11 // pred_check_branch
          %241 = sbr.rel (%p239) target = $region20
        $region19: #{_lambda_.2} parent=11 // pred_region
          _
        $region20: #{_lambda_.2} parent=11 // pred_fallthru
          _
        // Predicated region
        $region21: #{_lambda_.2} parent=11 // pred_check
          %p242 = pneg %p119
        $region22: #{_lambda_.2} parent=11 // pred_check_branch
          %244 = sbr.rel (%p242) target = $region24
        $region23: #{_lambda_.2} parent=11 // pred_region
          %246 = vsyncadd [#allocation10], 0
          %s247 = sshll.u32 %s4, 4
          %s248 = int_to_ptr.hbm [resolvable:$true] %s247
          %s249 = sshll.u32 [#allocation9], 4
          %s250 = int_to_ptr.vmem [resolvable:$true] %s249
          %255 = dma.hbm_to_vmem [thread:$0]  %s248, 3072, %s250, [#allocation10], 64, 64, 4
        $region24: #{_lambda_.2} parent=11 // pred_fallthru
          _
        // Predicated region
        $region25: #{_lambda_.2} parent=11 // pred_check
          %p256 = pneg %p140
        $region26: #{_lambda_.2} parent=11 // pred_check_branch
          %258 = sbr.rel (%p256) target = $region28
        $region27: #{_lambda_.2} parent=11 // pred_region
          _
        $region28: #{_lambda_.2} parent=11 // pred_fallthru
          _
        // Predicated region
        $region29: #{_lambda_.2} parent=11 // pred_check
          %p259 = pneg %p161
        $region30: #{_lambda_.2} parent=11 // pred_check_branch
          %261 = sbr.rel (%p259) target = $region32
        $region31: #{_lambda_.2} parent=11 // pred_region
          _
        $region32: #{_lambda_.2} parent=11 // pred_fallthru
          _
        // Predicated region
        $region33: #{_lambda_.2} parent=11 // pred_check
          %p262 = pneg %p182
        $region34: #{_lambda_.2} parent=11 // pred_check_branch
          %264 = sbr.rel (%p262) target = $region36
        $region35: #{_lambda_.2} parent=11 // pred_region
          _
        $region36: #{_lambda_.2} parent=11 // pred_fallthru
          _
      $region12: #{_lambda_.2} parent=5 // pred_fallthru
        _
      %p265 = scmp.lt.s32.totalorder %s16, 2
      // Predicated region
      $region37: #{_lambda_.2} parent=5 // pred_check
        %p266 = pneg %p265
      $region38: #{_lambda_.2} parent=5 // pred_check_branch
        %268 = sbr.rel (%p266) target = $region40
      $region39: #{_lambda_.2} parent=5 // pred_region
        // Predicated region
        $region41: #{_lambda_.2} parent=39 // pred_check
          %p269 = pneg %p50
        $region42: #{_lambda_.2} parent=39 // pred_check_branch
          %271 = sbr.rel (%p269) target = $region44
        $region43: #{_lambda_.2} parent=39 // pred_region
          %s272 = smul.u32 2, %s24
          %p273 = scmp.lt.s32.totalorder %s23, 1
          %s274 = scalar_select %p273, %s23, 1
          %p275 = scmp.lt.s32.totalorder %s272, 1
          %s276 = scalar_select %p275, %s272, 1
          %s277 = smul.addr %s274, 2
          %s278 = sadd.s32 %s276, %s277
          %s279 = smul.addr %s278, 4
          %s280 = scalar_lea.vmem %s1, %s279
          %s281 = smul.u32 2, %s24
        $region44: #{_lambda_.2} parent=39 // pred_fallthru
          _
      $region40: #{_lambda_.2} parent=5 // pred_fallthru
        _
      %p282 = scmp.le.s32.totalorder 1, %s16
      %p283 = scmp.lt.s32.totalorder %s16, 3
      %p284 = pnand %p282, %p283
      %p285 = pneg %p284
      // Predicated region
      $region45: #{_lambda_.2} parent=5 // pred_check
        _
      $region46: #{_lambda_.2} parent=5 // pred_check_branch
        %287 = sbr.rel (%p284) target = $region48
      $region47: #{_lambda_.2} parent=5 // pred_region
        %s288 = ssub.s32 %s16, 1
        // Predicated region
        $region49: #{_lambda_.2} parent=47 // pred_check
          %p289 = pneg %p77
        $region50: #{_lambda_.2} parent=47 // pred_check_branch
          %291 = sbr.rel (%p289) target = $region52
        $region51: #{_lambda_.2} parent=47 // pred_region
          %293 = dma.done [#allocation8], 3072
        $region52: #{_lambda_.2} parent=47 // pred_fallthru
          _
        // Predicated region
        $region53: #{_lambda_.2} parent=47 // pred_check
          %p294 = pneg %p119
        $region54: #{_lambda_.2} parent=47 // pred_check_branch
          %296 = sbr.rel (%p294) target = $region56
        $region55: #{_lambda_.2} parent=47 // pred_region
          %298 = dma.done [#allocation10], 3072
        $region56: #{_lambda_.2} parent=47 // pred_fallthru
          _
        %s299 = smul.u32 2, %s26
        %p300 = scmp.lt.s32.totalorder %s25, 1
        %s301 = scalar_select %p300, %s25, 1
        %p302 = scmp.lt.s32.totalorder %s299, 1
        %s303 = scalar_select %p302, %s299, 1
        %s304 = smul.addr %s301, 2
        %s305 = sadd.s32 %s303, %s304
        %s306 = smul.addr %s305, 4
        %s307 = scalar_lea.vmem %s1, %s306
        %p308 = pneg %p56
        %p309 = pneg %p53
        %p310 = pneg %p77
        %p311 = pneg %p74
        %p312 = pneg %p98
        %p313 = pneg %p95
        %p314 = pneg %p119
        %p315 = pneg %p116
        %p316 = pneg %p140
        %p317 = pneg %p137
        %p318 = pneg %p161
        %p319 = pneg %p158
        %p320 = pneg %p182
        %p321 = pneg %p179
        %p322 = pneg %p210
        %p323 = pneg %p207
        %s324 = smul.u32 2, %s26
        %p325 = scmp.lt.s32.totalorder %s25, 1
        %s326 = scalar_select %p325, %s25, 1
        %p327 = scmp.lt.s32.totalorder %s324, 1
        %s328 = scalar_select %p327, %s324, 1
        %s329 = smul.addr %s326, 2
        %s330 = sadd.s32 %s328, %s329
        %s331 = smul.addr %s330, 4
        %s332 = scalar_lea.vmem %s8, %s331
        %s333 = smul.u32 2, %s26
        %p334 = scmp.lt.s32.totalorder %s25, 1
        %s335 = scalar_select %p334, %s25, 1
        %p336 = scmp.lt.s32.totalorder %s333, 1
        %s337 = scalar_select %p336, %s333, 1
        %s338 = smul.addr %s335, 2
        %s339 = sadd.s32 %s337, %s338
        %s340 = smul.addr %s339, 4
        %s341 = scalar_lea.vmem %s1, %s340
        %s342 = smul.u32 2, %s26
        %s343 = smul.u32 2, %s26
        %p344 = scmp.lt.s32.totalorder %s25, 1
        %s345 = scalar_select %p344, %s25, 1
        %p346 = scmp.lt.s32.totalorder %s343, 1
        %s347 = scalar_select %p346, %s343, 1
        %s348 = smul.addr %s345, 2
        %s349 = sadd.s32 %s347, %s348
        %s350 = smul.addr %s349, 4
        %s351 = scalar_lea.vmem %s8, %s350
        %s352 = smul.u32 2, %s26
        %v353 = vld [vmem:[%s341] sm:$0xf]
        %v354 = vld [vmem:[%s341 + $0x4] sm:$0xf]
        %s355 = smul.u32 %s25, 2
        %s356 = smul.addr %s355, 4
        %s357 = scalar_lea.vmem %s0, %s356
        // Predicated region
        $region57: #{_lambda_.2} parent=47 // pred_check
          _
        $region58: #{_lambda_.2} parent=47 // pred_check_branch
          %359 = sbr.rel (0) target = $region60
        $region59: #{_lambda_.2} parent=47 // pred_region
          // Predicated region
          $region72: #{_lambda_.2} parent=59 // pred_check
            _
          $region73: #{_lambda_.2} parent=59 // pred_check_branch
            %375 = sbr.rel (0) target = $region75
          $region74: #{_lambda_.2} parent=59 // pred_region
            loop: start=0, step=1, limit=1
            $region76: #{_lambda_.2} parent=74 // loop_pre_header
              _
            $region77: #{_lambda_.2} parent=74 // loop_header
              %s377 = sphi 0, %s381
              %p378 = scmp.ge.s32.totalorder %s377, 1
              %s382 = sphi %s357, %s357
              %s383 = sphi [#allocation4], [#allocation4]
            $region78: #{_lambda_.2} parent=74 // loop_header_branch
              %380 = sbr.rel (%p378) target = $region82
            $region79: #{_lambda_.2} parent=74 // loop_body
              %v384 = vld [vmem:[%s382] sm:$0xff]
              %385 = vst [vmem:[%s383] sm:$0xff] %v384
            $region80: #{_lambda_.2} parent=74 // loop_footer
              %s381 = sadd.s32 1, %s377
            $region81: #{_lambda_.2} parent=74 // loop_footer_branch
              %376 = sbr.rel target = $region77
            $region82: #{_lambda_.2} parent=74 // loop_exit
              _
          $region75: #{_lambda_.2} parent=59 // pred_fallthru
            _
          // Predicated region
          $region83: #{_lambda_.2} parent=59 // pred_check
            _
          $region84: #{_lambda_.2} parent=59 // pred_check_branch
            %387 = sbr.rel target = $region86
          $region85: #{_lambda_.2} parent=59 // pred_region
            _
          $region86: #{_lambda_.2} parent=59 // pred_fallthru
            _
        $region60: #{_lambda_.2} parent=47 // pred_fallthru
          _
        // Predicated region
        $region61: #{_lambda_.2} parent=47 // pred_check
          _
        $region62: #{_lambda_.2} parent=47 // pred_check_branch
          %361 = sbr.rel target = $region64
        $region63: #{_lambda_.2} parent=47 // pred_region
          %s363 = ssub.s32 256, 1
          loop: start=0, step=1, limit=1
          $region65: #{_lambda_.2} parent=63 // loop_pre_header
            _
          $region66: #{_lambda_.2} parent=63 // loop_header
            %s365 = sphi 0, %s369
            %p366 = scmp.ge.s32.totalorder %s365, 1
            %s370 = sphi %s357, %s357
            %s371 = sphi [#allocation4], [#allocation4]
          $region67: #{_lambda_.2} parent=63 // loop_header_branch
            %368 = sbr.rel (%p366) target = $region71
          $region68: #{_lambda_.2} parent=63 // loop_body
            %v372 = vld [vmem:[%s370] sm:%s363]
            %373 = vst [vmem:[%s371] sm:%s363] %v372
          $region69: #{_lambda_.2} parent=63 // loop_footer
            %s369 = sadd.s32 1, %s365
          $region70: #{_lambda_.2} parent=63 // loop_footer_branch
            %364 = sbr.rel target = $region66
          $region71: #{_lambda_.2} parent=63 // loop_exit
            _
        $region64: #{_lambda_.2} parent=47 // pred_fallthru
          _
        // Predicated region
        $region87: #{_lambda_.2} parent=47 // pred_check
          _
        $region88: #{_lambda_.2} parent=47 // pred_check_branch
          %390 = sbr.rel (0) target = $region90
        $region89: #{_lambda_.2} parent=47 // pred_region
          %391 = vsyncadd [#allocation6], 128
        $region90: #{_lambda_.2} parent=47 // pred_fallthru
          _
        %s392 = scalar_lea.sflag [#allocation6], 1
        // Predicated region
        $region91: #{_lambda_.2} parent=47 // pred_check
          _
        $region92: #{_lambda_.2} parent=47 // pred_check_branch
          %394 = sbr.rel (0) target = $region94
        $region93: #{_lambda_.2} parent=47 // pred_region
          // Predicated region
          $region106: #{_lambda_.2} parent=93 // pred_check
            _
          $region107: #{_lambda_.2} parent=93 // pred_check_branch
            %410 = sbr.rel (0) target = $region109
          $region108: #{_lambda_.2} parent=93 // pred_region
            loop: start=0, step=1, limit=1
            $region110: #{_lambda_.2} parent=108 // loop_pre_header
              _
            $region111: #{_lambda_.2} parent=108 // loop_header
              %s412 = sphi 0, %s416
              %p413 = scmp.ge.s32.totalorder %s412, 1
              %s417 = sphi %s357, %s357
              %s418 = sphi [#allocation5], [#allocation5]
            $region112: #{_lambda_.2} parent=108 // loop_header_branch
              %415 = sbr.rel (%p413) target = $region116
            $region113: #{_lambda_.2} parent=108 // loop_body
              %v419 = vld [vmem:[%s417] sm:$0xff]
              %420 = vst [vmem:[%s418] sm:$0xff] %v419
            $region114: #{_lambda_.2} parent=108 // loop_footer
              %s416 = sadd.s32 1, %s412
            $region115: #{_lambda_.2} parent=108 // loop_footer_branch
              %411 = sbr.rel target = $region111
            $region116: #{_lambda_.2} parent=108 // loop_exit
              _
          $region109: #{_lambda_.2} parent=93 // pred_fallthru
            _
          // Predicated region
          $region117: #{_lambda_.2} parent=93 // pred_check
            _
          $region118: #{_lambda_.2} parent=93 // pred_check_branch
            %422 = sbr.rel target = $region120
          $region119: #{_lambda_.2} parent=93 // pred_region
            _
          $region120: #{_lambda_.2} parent=93 // pred_fallthru
            _
        $region94: #{_lambda_.2} parent=47 // pred_fallthru
          _
        // Predicated region
        $region95: #{_lambda_.2} parent=47 // pred_check
          _
        $region96: #{_lambda_.2} parent=47 // pred_check_branch
          %396 = sbr.rel target = $region98
        $region97: #{_lambda_.2} parent=47 // pred_region
          %s398 = ssub.s32 256, 1
          loop: start=0, step=1, limit=1
          $region99: #{_lambda_.2} parent=97 // loop_pre_header
            _
          $region100: #{_lambda_.2} parent=97 // loop_header
            %s400 = sphi 0, %s404
            %p401 = scmp.ge.s32.totalorder %s400, 1
            %s405 = sphi %s357, %s357
            %s406 = sphi [#allocation5], [#allocation5]
          $region101: #{_lambda_.2} parent=97 // loop_header_branch
            %403 = sbr.rel (%p401) target = $region105
          $region102: #{_lambda_.2} parent=97 // loop_body
            %v407 = vld [vmem:[%s405] sm:%s398]
            %408 = vst [vmem:[%s406] sm:%s398] %v407
          $region103: #{_lambda_.2} parent=97 // loop_footer
            %s404 = sadd.s32 1, %s400
          $region104: #{_lambda_.2} parent=97 // loop_footer_branch
            %399 = sbr.rel target = $region100
          $region105: #{_lambda_.2} parent=97 // loop_exit
            _
        $region98: #{_lambda_.2} parent=47 // pred_fallthru
          _
        // Predicated region
        $region121: #{_lambda_.2} parent=47 // pred_check
          _
        $region122: #{_lambda_.2} parent=47 // pred_check_branch
          %425 = sbr.rel (0) target = $region124
        $region123: #{_lambda_.2} parent=47 // pred_region
          %426 = vsyncadd %s392, 128
        $region124: #{_lambda_.2} parent=47 // pred_fallthru
          _
        %vm429 = vcmask 1040384
        %vm430 = vcmask 1044484
        %vm431 = vmor %vm429, %vm430
        %v432 = vrot.slane %v353, 7
        %v433 = vrot.slane %v432, 4
        %v434 = vrot.slane %v354, 7
        %v435 = vsel %vm431, %v433, %v434
        %v436 = vrot.slane %v434, 4
        %440 = vst [vmem:[#allocation2] sm:$0xe] %v432
        %441 = vst [vmem:[#allocation2 + $0x4] sm:$0xf] %v435
        %442 = vst [vmem:[#allocation2 + $0x8] sm:$0x1] %v436
        %s443 = smul.u32 4, 2
        %s444 = smul.u32 %s443, 1
        %s445 = sshll.u32 %s444, 4
        %446 = dma.done [#allocation6], %s445
        %v447 = vld [vmem:[#allocation4 + $0x4] sm:$0x8]
        %v449 = vrot.slane %v447, 7
        %v450 = vrot.slane %v449, 4
        %452 = vst [vmem:[#allocation2] sm:$0x1] %v450
        %s453 = sshll.u32 %s444, 4
        %454 = dma.done %s392, %s453
        %v455 = vld [vmem:[#allocation5] sm:$0x1]
        %v457 = vrot.slane %v455, 7
        %459 = vst [vmem:[#allocation2 + $0x8] sm:$0x2] %v457
        %v460 = vld [vmem:[#allocation2] sm:$0xf]
        %v461 = vld [vmem:[#allocation2 + $0x4] sm:$0xf]
        %v462 = vld [vmem:[#allocation2 + $0x8] sm:$0x1]
        %v463 = vld [vmem:[#allocation7] sm:$0xf]
        %v464 = vld [vmem:[#allocation7 + $0x4] sm:$0xf]
        %v465 = vld [vmem:[#allocation7 + $0x8] sm:$0xf]
        %v466 = vld [vmem:[#allocation7 + $0xc] sm:$0xf]
        %v467 = vld [vmem:[#allocation7 + $0x10] sm:$0xf]
        %v468 = vld [vmem:[#allocation7 + $0x14] sm:$0xf]
        %v469 = vld [vmem:[#allocation7 + $0x18] sm:$0xf]
        %v470 = vld [vmem:[#allocation7 + $0x1c] sm:$0xf]
        %v471 = vld [vmem:[#allocation7 + $0x20] sm:$0xf]
        %v472 = vld [vmem:[#allocation7 + $0x24] sm:$0xf]
        %v473 = vld [vmem:[#allocation7 + $0x28] sm:$0xf]
        %v474 = vld [vmem:[#allocation7 + $0x2c] sm:$0xf]
        %v475 = vld [vmem:[#allocation7 + $0x30] sm:$0xf]
        %v476 = vld [vmem:[#allocation7 + $0x34] sm:$0xf]
        %v477 = vld [vmem:[#allocation7 + $0x38] sm:$0xf]
        %v478 = vld [vmem:[#allocation7 + $0x3c] sm:$0xf]
        %v479 = vld [vmem:[#allocation2 + $0x8] sm:$0x3]
        %v480 = vld [vmem:[#allocation7 + $0x40] sm:$0xf]
        %v481 = vld [vmem:[#allocation7 + $0x44] sm:$0xf]
        %v482 = vld [vmem:[#allocation7 + $0x48] sm:$0xf]
        %v483 = vld [vmem:[#allocation7 + $0x4c] sm:$0xf]
        %v484 = vld [vmem:[#allocation7 + $0x50] sm:$0xf]
        %v485 = vld [vmem:[#allocation7 + $0x54] sm:$0xf]
        %v486 = vld [vmem:[#allocation7 + $0x58] sm:$0xf]
        %v487 = vld [vmem:[#allocation7 + $0x5c] sm:$0xf]
        %v488 = vld [vmem:[#allocation7 + $0x60] sm:$0xf]
        %v489 = vld [vmem:[#allocation7 + $0x64] sm:$0xf]
        %v490 = vld [vmem:[#allocation7 + $0x68] sm:$0xf]
        %v491 = vld [vmem:[#allocation7 + $0x6c] sm:$0xf]
        %v492 = vld [vmem:[#allocation7 + $0x70] sm:$0xf]
        %v493 = vld [vmem:[#allocation7 + $0x74] sm:$0xf]
        %v494 = vld [vmem:[#allocation7 + $0x78] sm:$0xf]
        %v495 = vld [vmem:[#allocation7 + $0x7c] sm:$0xf]
        %v499 = vunpack.c.l.b16 %v460
        %v500 = vunpack.c.l.b16 %v461
        %v501 = vunpack.c.l.b16 %v479
        %v502 = vpack.c.b16 %v500, %v499
        %v503 = vpack.c.b16 %v501, %v501
        %vm504 = vsmask.f32 7424
        %v506 = vshrl.u32 %v502, 16
        %v508 = vshll.u32 %v502, 16
        %v510 = vrot.slane %v508, 1
        %v511 = vor.u32 %v506, %v510
        %v513 = vshll.u32 %v503, 16
        %v515 = vrot.slane %v513, 1
        %v516 = vsel %vm504, %v511, %v515
        %v517 = vshrl.u32 %v503, 16
        %v519 = vor.u32 %v517, %v515
        %v538 = vunpack.c.l.b16 %v480
        %v539 = vunpack.c.l.b16 %v481
        %v540 = vunpack.c.l.b16 %v482
        %v541 = vunpack.c.l.b16 %v483
        %v542 = vunpack.c.l.b16 %v484
        %v543 = vunpack.c.l.b16 %v485
        %v544 = vunpack.c.l.b16 %v486
        %v545 = vunpack.c.l.b16 %v487
        %v546 = vunpack.c.l.b16 %v488
        %v547 = vunpack.c.l.b16 %v489
        %v548 = vunpack.c.l.b16 %v490
        %v549 = vunpack.c.l.b16 %v491
        %v550 = vunpack.c.l.b16 %v492
        %v551 = vunpack.c.l.b16 %v493
        %v552 = vunpack.c.l.b16 %v494
        %v553 = vunpack.c.l.b16 %v495
        %v554 = vpack.c.b16 %v539, %v538
        %v555 = vpack.c.b16 %v541, %v540
        %v556 = vpack.c.b16 %v543, %v542
        %v557 = vpack.c.b16 %v545, %v544
        %v558 = vpack.c.b16 %v547, %v546
        %v559 = vpack.c.b16 %v549, %v548
        %v560 = vpack.c.b16 %v551, %v550
        %v561 = vpack.c.b16 %v553, %v552
        %570 = vmatpush.bf16.msra.mxu0 %v561
        %571 = vmatpush.bf16.msra.mxu0 %v560
        %572 = vmatpush.bf16.msra.mxu0 %v559
        %573 = vmatpush.bf16.msra.mxu0 %v558
        %574 = vmatpush.bf16.msra.mxu0 %v557
        %575 = vmatpush.bf16.msra.mxu0 %v556
        %576 = vmatpush.bf16.msra.mxu0 %v555
        %577 = vmatpush.bf16.msra.mxu0 %v554
        %578 = vmatmul.bf16.gmra.mxu0 %v516
        %v579 = vpop.f32.mrf.mxu0
        %v580 = vadd.f32 0.0, %v579
        %v581 = vpop.f32.mrf.mxu0
        %v582 = vadd.f32 0.0, %v581
        %583 = vmatmul.bf16.gmra.mxu0 %v519
        %v584 = vpop.f32.mrf.mxu0
        %v585 = vadd.f32 0.0, %v584
        %v586 = vpop.f32.mrf.mxu0
        %587 = vdwg.mxu0
        %v589 = vunpack.c.l.b16 %v462
        %v590 = vpack.c.b16 %v589, %v589
        %v609 = vunpack.c.l.b16 %v463
        %v610 = vunpack.c.l.b16 %v464
        %v611 = vunpack.c.l.b16 %v465
        %v612 = vunpack.c.l.b16 %v466
        %v613 = vunpack.c.l.b16 %v467
        %v614 = vunpack.c.l.b16 %v468
        %v615 = vunpack.c.l.b16 %v469
        %v616 = vunpack.c.l.b16 %v470
        %v617 = vunpack.c.l.b16 %v471
        %v618 = vunpack.c.l.b16 %v472
        %v619 = vunpack.c.l.b16 %v473
        %v620 = vunpack.c.l.b16 %v474
        %v621 = vunpack.c.l.b16 %v475
        %v622 = vunpack.c.l.b16 %v476
        %v623 = vunpack.c.l.b16 %v477
        %v624 = vunpack.c.l.b16 %v478
        %v625 = vpack.c.b16 %v610, %v609
        %v626 = vpack.c.b16 %v612, %v611
        %v627 = vpack.c.b16 %v614, %v613
        %v628 = vpack.c.b16 %v616, %v615
        %v629 = vpack.c.b16 %v618, %v617
        %v630 = vpack.c.b16 %v620, %v619
        %v631 = vpack.c.b16 %v622, %v621
        %v632 = vpack.c.b16 %v624, %v623
        %641 = vmatpush.bf16.msra.mxu0 %v632
        %642 = vmatpush.bf16.msra.mxu0 %v631
        %643 = vmatpush.bf16.msra.mxu0 %v630
        %644 = vmatpush.bf16.msra.mxu0 %v629
        %645 = vmatpush.bf16.msra.mxu0 %v628
        %646 = vmatpush.bf16.msra.mxu0 %v627
        %647 = vmatpush.bf16.msra.mxu0 %v626
        %648 = vmatpush.bf16.msra.mxu0 %v625
        %649 = vmatmul.bf16.gmra.mxu0 %v502
        %v650 = vpop.f32.mrf.mxu0
        %v651 = vadd.f32 %v580, %v650
        %v652 = vpop.f32.mrf.mxu0
        %v653 = vadd.f32 %v582, %v652
        %654 = vmatmul.bf16.gmra.mxu0 %v590
        %v655 = vpop.f32.mrf.mxu0
        %v656 = vadd.f32 %v585, %v655
        %v657 = vpop.f32.mrf.mxu0
        %658 = vdwg.mxu0
        %v659 = vld [vmem:[#allocation2] sm:$0xe]
        %v660 = vld [vmem:[#allocation7 + $0x80] sm:$0xf]
        %v661 = vld [vmem:[#allocation7 + $0x84] sm:$0xf]
        %v662 = vld [vmem:[#allocation7 + $0x88] sm:$0xf]
        %v663 = vld [vmem:[#allocation7 + $0x8c] sm:$0xf]
        %v664 = vld [vmem:[#allocation7 + $0x90] sm:$0xf]
        %v665 = vld [vmem:[#allocation7 + $0x94] sm:$0xf]
        %v666 = vld [vmem:[#allocation7 + $0x98] sm:$0xf]
        %v667 = vld [vmem:[#allocation7 + $0x9c] sm:$0xf]
        %v668 = vld [vmem:[#allocation7 + $0xa0] sm:$0xf]
        %v669 = vld [vmem:[#allocation7 + $0xa4] sm:$0xf]
        %v670 = vld [vmem:[#allocation7 + $0xa8] sm:$0xf]
        %v671 = vld [vmem:[#allocation7 + $0xac] sm:$0xf]
        %v672 = vld [vmem:[#allocation7 + $0xb0] sm:$0xf]
        %v673 = vld [vmem:[#allocation7 + $0xb4] sm:$0xf]
        %v674 = vld [vmem:[#allocation7 + $0xb8] sm:$0xf]
        %v675 = vld [vmem:[#allocation7 + $0xbc] sm:$0xf]
        %v677 = vunpack.c.l.b16 %v659
        %v678 = vpack.c.b16 %v500, %v677
        %vm679 = vcmask 1046528
        %v680 = vrot.slane %v678, 1
        %v681 = vrot.slane %v503, 1
        %v682 = vsel %vm679, %v680, %v681
        %v701 = vunpack.c.l.b16 %v660
        %v702 = vunpack.c.l.b16 %v661
        %v703 = vunpack.c.l.b16 %v662
        %v704 = vunpack.c.l.b16 %v663
        %v705 = vunpack.c.l.b16 %v664
        %v706 = vunpack.c.l.b16 %v665
        %v707 = vunpack.c.l.b16 %v666
        %v708 = vunpack.c.l.b16 %v667
        %v709 = vunpack.c.l.b16 %v668
        %v710 = vunpack.c.l.b16 %v669
        %v711 = vunpack.c.l.b16 %v670
        %v712 = vunpack.c.l.b16 %v671
        %v713 = vunpack.c.l.b16 %v672
        %v714 = vunpack.c.l.b16 %v673
        %v715 = vunpack.c.l.b16 %v674
        %v716 = vunpack.c.l.b16 %v675
        %v717 = vpack.c.b16 %v702, %v701
        %v718 = vpack.c.b16 %v704, %v703
        %v719 = vpack.c.b16 %v706, %v705
        %v720 = vpack.c.b16 %v708, %v707
        %v721 = vpack.c.b16 %v710, %v709
        %v722 = vpack.c.b16 %v712, %v711
        %v723 = vpack.c.b16 %v714, %v713
        %v724 = vpack.c.b16 %v716, %v715
        %733 = vmatpush.bf16.msra.mxu0 %v724
        %734 = vmatpush.bf16.msra.mxu0 %v723
        %735 = vmatpush.bf16.msra.mxu0 %v722
        %736 = vmatpush.bf16.msra.mxu0 %v721
        %737 = vmatpush.bf16.msra.mxu0 %v720
        %738 = vmatpush.bf16.msra.mxu0 %v719
        %739 = vmatpush.bf16.msra.mxu0 %v718
        %740 = vmatpush.bf16.msra.mxu0 %v717
        %741 = vmatmul.bf16.gmra.mxu0 %v682
        %v742 = vpop.f32.mrf.mxu0
        %v743 = vadd.f32 0.0, %v742
        %v744 = vpop.f32.mrf.mxu0
        %v745 = vadd.f32 0.0, %v744
        %746 = vmatmul.bf16.gmra.mxu0 %v681
        %v747 = vpop.f32.mrf.mxu0
        %v748 = vadd.f32 0.0, %v747
        %v749 = vpop.f32.mrf.mxu0
        %750 = vdwg.mxu0
        %v751 = vadd.f32 %v651, %v743
        %v752 = vadd.f32 %v653, %v745
        %v753 = vadd.f32 %v656, %v748
        %v754 = vld [vmem:[%s3] sm:$0x1]
        %v756 = vperm.slane %v754, 0
        %v758 = vadd.f32 %v751, %v756
        %v759 = vadd.f32 %v752, %v756
        %v760 = vadd.f32 %v753, %v756
        %v761 = vmax.f32 %v758, 0.0
        %v762 = vmax.f32 %v759, 0.0
        %v763 = vmax.f32 %v760, 0.0
        %v764 = vpack.c.bf16 %v761, %v761
        %v765 = vpack.c.bf16 %v762, %v762
        %v766 = vpack.c.bf16 %v763, %v763
        %767 = vst [vmem:[#allocation3] sm:$0xf] %v764
        %768 = vst [vmem:[#allocation3 + $0x4] sm:$0xf] %v765
        %769 = vst [vmem:[#allocation3 + $0x8] sm:$0x1] %v766
        %v770 = vld [vmem:[#allocation3] sm:$0xf]
        %v771 = vld [vmem:[#allocation3 + $0x4] sm:$0xf]
        %v772 = vld [vmem:[#allocation9] sm:$0xf]
        %v773 = vld [vmem:[#allocation9 + $0x4] sm:$0xf]
        %v774 = vld [vmem:[#allocation9 + $0x8] sm:$0xf]
        %v775 = vld [vmem:[#allocation9 + $0xc] sm:$0xf]
        %v776 = vld [vmem:[#allocation9 + $0x10] sm:$0xf]
        %v777 = vld [vmem:[#allocation9 + $0x14] sm:$0xf]
        %v778 = vld [vmem:[#allocation9 + $0x18] sm:$0xf]
        %v779 = vld [vmem:[#allocation9 + $0x1c] sm:$0xf]
        %v780 = vld [vmem:[#allocation9 + $0x20] sm:$0xf]
        %v781 = vld [vmem:[#allocation9 + $0x24] sm:$0xf]
        %v782 = vld [vmem:[#allocation9 + $0x28] sm:$0xf]
        %v783 = vld [vmem:[#allocation9 + $0x2c] sm:$0xf]
        %v784 = vld [vmem:[#allocation9 + $0x30] sm:$0xf]
        %v785 = vld [vmem:[#allocation9 + $0x34] sm:$0xf]
        %v786 = vld [vmem:[#allocation9 + $0x38] sm:$0xf]
        %v787 = vld [vmem:[#allocation9 + $0x3c] sm:$0xf]
        %v788 = vld [vmem:[#allocation3 + $0x8] sm:$0x1]
        %v789 = vld [vmem:[#allocation9 + $0x40] sm:$0xf]
        %v790 = vld [vmem:[#allocation9 + $0x44] sm:$0xf]
        %v791 = vld [vmem:[#allocation9 + $0x48] sm:$0xf]
        %v792 = vld [vmem:[#allocation9 + $0x4c] sm:$0xf]
        %v793 = vld [vmem:[#allocation9 + $0x50] sm:$0xf]
        %v794 = vld [vmem:[#allocation9 + $0x54] sm:$0xf]
        %v795 = vld [vmem:[#allocation9 + $0x58] sm:$0xf]
        %v796 = vld [vmem:[#allocation9 + $0x5c] sm:$0xf]
        %v797 = vld [vmem:[#allocation9 + $0x60] sm:$0xf]
        %v798 = vld [vmem:[#allocation9 + $0x64] sm:$0xf]
        %v799 = vld [vmem:[#allocation9 + $0x68] sm:$0xf]
        %v800 = vld [vmem:[#allocation9 + $0x6c] sm:$0xf]
        %v801 = vld [vmem:[#allocation9 + $0x70] sm:$0xf]
        %v802 = vld [vmem:[#allocation9 + $0x74] sm:$0xf]
        %v803 = vld [vmem:[#allocation9 + $0x78] sm:$0xf]
        %v804 = vld [vmem:[#allocation9 + $0x7c] sm:$0xf]
        %v808 = vunpack.c.l.b16 %v770
        %v809 = vunpack.c.l.b16 %v771
        %v810 = vunpack.c.l.b16 %v788
        %v811 = vpack.c.b16 %v809, %v808
        %v812 = vpack.c.b16 %v810, %v810
        %v814 = vshrl.u32 %v811, 16
        %v816 = vshll.u32 %v811, 16
        %v818 = vrot.slane %v816, 1
        %v819 = vor.u32 %v814, %v818
        %v821 = vshll.u32 %v812, 16
        %v823 = vrot.slane %v821, 1
        %v824 = vsel %vm504, %v819, %v823
        %v842 = vunpack.c.l.b16 %v789
        %v843 = vunpack.c.l.b16 %v790
        %v844 = vunpack.c.l.b16 %v791
        %v845 = vunpack.c.l.b16 %v792
        %v846 = vunpack.c.l.b16 %v793
        %v847 = vunpack.c.l.b16 %v794
        %v848 = vunpack.c.l.b16 %v795
        %v849 = vunpack.c.l.b16 %v796
        %v850 = vunpack.c.l.b16 %v797
        %v851 = vunpack.c.l.b16 %v798
        %v852 = vunpack.c.l.b16 %v799
        %v853 = vunpack.c.l.b16 %v800
        %v854 = vunpack.c.l.b16 %v801
        %v855 = vunpack.c.l.b16 %v802
        %v856 = vunpack.c.l.b16 %v803
        %v857 = vunpack.c.l.b16 %v804
        %v858 = vpack.c.b16 %v843, %v842
        %v859 = vpack.c.b16 %v845, %v844
        %v860 = vpack.c.b16 %v847, %v846
        %v861 = vpack.c.b16 %v849, %v848
        %v862 = vpack.c.b16 %v851, %v850
        %v863 = vpack.c.b16 %v853, %v852
        %v864 = vpack.c.b16 %v855, %v854
        %v865 = vpack.c.b16 %v857, %v856
        %874 = vmatpush.bf16.msra.mxu0 %v865
        %875 = vmatpush.bf16.msra.mxu0 %v864
        %876 = vmatpush.bf16.msra.mxu0 %v863
        %877 = vmatpush.bf16.msra.mxu0 %v862
        %878 = vmatpush.bf16.msra.mxu0 %v861
        %879 = vmatpush.bf16.msra.mxu0 %v860
        %880 = vmatpush.bf16.msra.mxu0 %v859
        %881 = vmatpush.bf16.msra.mxu0 %v858
        %882 = vmatmul.bf16.gmra.mxu0 %v824
        %v883 = vpop.f32.mrf.mxu0
        %v884 = vadd.f32 0.0, %v883
        %v885 = vpop.f32.mrf.mxu0
        %v886 = vadd.f32 0.0, %v885
        %887 = vdwg.mxu0
        %v905 = vunpack.c.l.b16 %v772
        %v906 = vunpack.c.l.b16 %v773
        %v907 = vunpack.c.l.b16 %v774
        %v908 = vunpack.c.l.b16 %v775
        %v909 = vunpack.c.l.b16 %v776
        %v910 = vunpack.c.l.b16 %v777
        %v911 = vunpack.c.l.b16 %v778
        %v912 = vunpack.c.l.b16 %v779
        %v913 = vunpack.c.l.b16 %v780
        %v914 = vunpack.c.l.b16 %v781
        %v915 = vunpack.c.l.b16 %v782
        %v916 = vunpack.c.l.b16 %v783
        %v917 = vunpack.c.l.b16 %v784
        %v918 = vunpack.c.l.b16 %v785
        %v919 = vunpack.c.l.b16 %v786
        %v920 = vunpack.c.l.b16 %v787
        %v921 = vpack.c.b16 %v906, %v905
        %v922 = vpack.c.b16 %v908, %v907
        %v923 = vpack.c.b16 %v910, %v909
        %v924 = vpack.c.b16 %v912, %v911
        %v925 = vpack.c.b16 %v914, %v913
        %v926 = vpack.c.b16 %v916, %v915
        %v927 = vpack.c.b16 %v918, %v917
        %v928 = vpack.c.b16 %v920, %v919
        %937 = vmatpush.bf16.msra.mxu0 %v928
        %938 = vmatpush.bf16.msra.mxu0 %v927
        %939 = vmatpush.bf16.msra.mxu0 %v926
        %940 = vmatpush.bf16.msra.mxu0 %v925
        %941 = vmatpush.bf16.msra.mxu0 %v924
        %942 = vmatpush.bf16.msra.mxu0 %v923
        %943 = vmatpush.bf16.msra.mxu0 %v922
        %944 = vmatpush.bf16.msra.mxu0 %v921
        %945 = vmatmul.bf16.gmra.mxu0 %v811
        %v946 = vpop.f32.mrf.mxu0
        %v947 = vadd.f32 %v884, %v946
        %v948 = vpop.f32.mrf.mxu0
        %v949 = vadd.f32 %v886, %v948
        %950 = vdwg.mxu0
        %v951 = vld [vmem:[#allocation3] sm:$0xe]
        %v952 = vld [vmem:[#allocation9 + $0x80] sm:$0xf]
        %v953 = vld [vmem:[#allocation9 + $0x84] sm:$0xf]
        %v954 = vld [vmem:[#allocation9 + $0x88] sm:$0xf]
        %v955 = vld [vmem:[#allocation9 + $0x8c] sm:$0xf]
        %v956 = vld [vmem:[#allocation9 + $0x90] sm:$0xf]
        %v957 = vld [vmem:[#allocation9 + $0x94] sm:$0xf]
        %v958 = vld [vmem:[#allocation9 + $0x98] sm:$0xf]
        %v959 = vld [vmem:[#allocation9 + $0x9c] sm:$0xf]
        %v960 = vld [vmem:[#allocation9 + $0xa0] sm:$0xf]
        %v961 = vld [vmem:[#allocation9 + $0xa4] sm:$0xf]
        %v962 = vld [vmem:[#allocation9 + $0xa8] sm:$0xf]
        %v963 = vld [vmem:[#allocation9 + $0xac] sm:$0xf]
        %v964 = vld [vmem:[#allocation9 + $0xb0] sm:$0xf]
        %v965 = vld [vmem:[#allocation9 + $0xb4] sm:$0xf]
        %v966 = vld [vmem:[#allocation9 + $0xb8] sm:$0xf]
        %v967 = vld [vmem:[#allocation9 + $0xbc] sm:$0xf]
        %v969 = vunpack.c.l.b16 %v951
        %v970 = vpack.c.b16 %v809, %v969
        %v971 = vrot.slane %v970, 1
        %v972 = vrot.slane %v812, 1
        %v973 = vsel %vm679, %v971, %v972
        %v991 = vunpack.c.l.b16 %v952
        %v992 = vunpack.c.l.b16 %v953
        %v993 = vunpack.c.l.b16 %v954
        %v994 = vunpack.c.l.b16 %v955
        %v995 = vunpack.c.l.b16 %v956
        %v996 = vunpack.c.l.b16 %v957
        %v997 = vunpack.c.l.b16 %v958
        %v998 = vunpack.c.l.b16 %v959
        %v999 = vunpack.c.l.b16 %v960
        %v1000 = vunpack.c.l.b16 %v961
        %v1001 = vunpack.c.l.b16 %v962
        %v1002 = vunpack.c.l.b16 %v963
        %v1003 = vunpack.c.l.b16 %v964
        %v1004 = vunpack.c.l.b16 %v965
        %v1005 = vunpack.c.l.b16 %v966
        %v1006 = vunpack.c.l.b16 %v967
        %v1007 = vpack.c.b16 %v992, %v991
        %v1008 = vpack.c.b16 %v994, %v993
        %v1009 = vpack.c.b16 %v996, %v995
        %v1010 = vpack.c.b16 %v998, %v997
        %v1011 = vpack.c.b16 %v1000, %v999
        %v1012 = vpack.c.b16 %v1002, %v1001
        %v1013 = vpack.c.b16 %v1004, %v1003
        %v1014 = vpack.c.b16 %v1006, %v1005
        %1023 = vmatpush.bf16.msra.mxu0 %v1014
        %1024 = vmatpush.bf16.msra.mxu0 %v1013
        %1025 = vmatpush.bf16.msra.mxu0 %v1012
        %1026 = vmatpush.bf16.msra.mxu0 %v1011
        %1027 = vmatpush.bf16.msra.mxu0 %v1010
        %1028 = vmatpush.bf16.msra.mxu0 %v1009
        %1029 = vmatpush.bf16.msra.mxu0 %v1008
        %1030 = vmatpush.bf16.msra.mxu0 %v1007
        %1031 = vmatmul.bf16.gmra.mxu0 %v973
        %v1032 = vpop.f32.mrf.mxu0
        %v1033 = vadd.f32 0.0, %v1032
        %v1034 = vpop.f32.mrf.mxu0
        %v1035 = vadd.f32 0.0, %v1034
        %1036 = vdwg.mxu0
        %v1037 = vadd.f32 %v947, %v1033
        %v1038 = vadd.f32 %v949, %v1035
        %v1039 = vld [vmem:[%s5] sm:$0x1]
        %v1041 = vperm.slane %v1039, 0
        %v1043 = vadd.f32 %v1037, %v1041
        %v1044 = vadd.f32 %v1038, %v1041
        %v1045 = vmax.f32 %v1043, 0.0
        %v1046 = vmax.f32 %v1044, 0.0
        %v1047 = vld [vmem:[%s6] sm:$0xf]
        %v1048 = vld [vmem:[%s6 + $0x4] sm:$0xf]
        %v1049 = vld [vmem:[%s6 + $0x8] sm:$0xf]
        %v1050 = vld [vmem:[%s6 + $0xc] sm:$0xf]
        %v1051 = vld [vmem:[%s6 + $0x10] sm:$0xf]
        %v1052 = vld [vmem:[%s6 + $0x14] sm:$0xf]
        %v1053 = vld [vmem:[%s6 + $0x18] sm:$0xf]
        %v1054 = vld [vmem:[%s6 + $0x1c] sm:$0xf]
        %v1055 = vld [vmem:[%s6 + $0x20] sm:$0xf]
        %v1056 = vld [vmem:[%s6 + $0x24] sm:$0xf]
        %v1057 = vld [vmem:[%s6 + $0x28] sm:$0xf]
        %v1058 = vld [vmem:[%s6 + $0x2c] sm:$0xf]
        %v1059 = vld [vmem:[%s6 + $0x30] sm:$0xf]
        %v1060 = vld [vmem:[%s6 + $0x34] sm:$0xf]
        %v1061 = vld [vmem:[%s6 + $0x38] sm:$0xf]
        %v1062 = vld [vmem:[%s6 + $0x3c] sm:$0xf]
        %v1063 = vld [vmem:[%s7] sm:$0x1]
        %v1065 = vperm.slane %v1063, 0
        %v1067 = vunpack.c.l.b16 %v353
        %v1068 = vunpack.c.l.b16 %v354
        %v1069 = vpack.c.b16 %v1068, %v1067
        %v1087 = vunpack.c.l.b16 %v1047
        %v1088 = vunpack.c.l.b16 %v1048
        %v1089 = vunpack.c.l.b16 %v1049
        %v1090 = vunpack.c.l.b16 %v1050
        %v1091 = vunpack.c.l.b16 %v1051
        %v1092 = vunpack.c.l.b16 %v1052
        %v1093 = vunpack.c.l.b16 %v1053
        %v1094 = vunpack.c.l.b16 %v1054
        %v1095 = vunpack.c.l.b16 %v1055
        %v1096 = vunpack.c.l.b16 %v1056
        %v1097 = vunpack.c.l.b16 %v1057
        %v1098 = vunpack.c.l.b16 %v1058
        %v1099 = vunpack.c.l.b16 %v1059
        %v1100 = vunpack.c.l.b16 %v1060
        %v1101 = vunpack.c.l.b16 %v1061
        %v1102 = vunpack.c.l.b16 %v1062
        %v1103 = vpack.c.b16 %v1088, %v1087
        %v1104 = vpack.c.b16 %v1090, %v1089
        %v1105 = vpack.c.b16 %v1092, %v1091
        %v1106 = vpack.c.b16 %v1094, %v1093
        %v1107 = vpack.c.b16 %v1096, %v1095
        %v1108 = vpack.c.b16 %v1098, %v1097
        %v1109 = vpack.c.b16 %v1100, %v1099
        %v1110 = vpack.c.b16 %v1102, %v1101
        %1119 = vmatpush.bf16.msra.mxu0 %v1110
        %1120 = vmatpush.bf16.msra.mxu0 %v1109
        %1121 = vmatpush.bf16.msra.mxu0 %v1108
        %1122 = vmatpush.bf16.msra.mxu0 %v1107
        %1123 = vmatpush.bf16.msra.mxu0 %v1106
        %1124 = vmatpush.bf16.msra.mxu0 %v1105
        %1125 = vmatpush.bf16.msra.mxu0 %v1104
        %1126 = vmatpush.bf16.msra.mxu0 %v1103
        %1127 = vmatmul.bf16.gmra.mxu0 %v1069
        %v1128 = vpop.f32.mrf.mxu0
        %v1129 = vadd.f32 %v1065, %v1128
        %v1130 = vpop.f32.mrf.mxu0
        %v1131 = vadd.f32 %v1065, %v1130
        %1132 = vdwg.mxu0
        %v1133 = vadd.f32 %v1045, %v1129
        %v1134 = vadd.f32 %v1046, %v1131
        %v1135 = vpack.c.bf16 %v1133, %v1133
        %v1136 = vpack.c.bf16 %v1134, %v1134
        %1137 = vst [vmem:[%s351] sm:$0xf] %v1135
        %1138 = vst [vmem:[%s351 + $0x4] sm:$0xf] %v1136
        %s1139 = smul.u32 2, %s26
        %p1140 = scmp.lt.s32.totalorder %s25, 1
        %s1141 = scalar_select %p1140, %s25, 1
        %p1142 = scmp.lt.s32.totalorder %s1139, 1
        %s1143 = scalar_select %p1142, %s1139, 1
        %s1144 = smul.addr %s1141, 2
        %s1145 = sadd.s32 %s1143, %s1144
        %s1146 = smul.addr %s1145, 4
        %s1147 = scalar_lea.vmem %s8, %s1146
        // Predicated region
        $region125: #{_lambda_.2} parent=47 // pred_check
          %p1148 = pneg %p207
        $region126: #{_lambda_.2} parent=47 // pred_check_branch
          %1150 = sbr.rel (%p1148) target = $region128
        $region127: #{_lambda_.2} parent=47 // pred_region
          %s1151 = smul.u32 2, %s26
        $region128: #{_lambda_.2} parent=47 // pred_fallthru
          _
      $region48: #{_lambda_.2} parent=5 // pred_fallthru
        _
      %p1152 = scmp.le.s32.totalorder 2, %s16
      // Predicated region
      $region129: #{_lambda_.2} parent=5 // pred_check
        %p1153 = pneg %p1152
      $region130: #{_lambda_.2} parent=5 // pred_check_branch
        %1155 = sbr.rel (%p1153) target = $region132
      $region131: #{_lambda_.2} parent=5 // pred_region
        %s1156 = ssub.s32 %s16, 2
        // Predicated region
        $region133: #{_lambda_.2} parent=131 // pred_check
          %p1157 = pneg %p213
        $region134: #{_lambda_.2} parent=131 // pred_check_branch
          %1159 = sbr.rel (%p1157) target = $region136
        $region135: #{_lambda_.2} parent=131 // pred_region
          %s1160 = smul.u32 2, %s28
          %p1161 = scmp.lt.s32.totalorder %s27, 1
          %s1162 = scalar_select %p1161, %s27, 1
          %p1163 = scmp.lt.s32.totalorder %s1160, 1
          %s1164 = scalar_select %p1163, %s1160, 1
          %s1165 = smul.addr %s1162, 2
          %s1166 = sadd.s32 %s1164, %s1165
          %s1167 = smul.addr %s1166, 4
          %s1168 = scalar_lea.vmem %s8, %s1167
        $region136: #{_lambda_.2} parent=131 // pred_fallthru
          _
      $region132: #{_lambda_.2} parent=5 // pred_fallthru
        _
    $region6: #{_lambda_.2} parent=1 // loop_footer
      %s20 = sadd.s32 1, %s16
    $region7: #{_lambda_.2} parent=1 // loop_footer_branch
      %15 = sbr.rel target = $region3
    $region8: #{_lambda_.2} parent=1 // loop_exit
      _
    %1169 = vsyncpa [#allocation8], 1
    %s1170 = scalar_lea.sflag [#allocation8], 1
    %1171 = vsyncpa %s1170, 1
    %1172 = vsyncpa [#allocation10], 1
  %1173 = vsyncmov [#allocation6]
  %s1174 = vpop.sfrf %1173
  %p1175 = scmp.eq.s32.totalorder %s1174, 0
  %p1176 = pneg %p1175
  %1178 = shalt.err (%p1176)
  %s1179 = scalar_lea.sflag [#allocation6], 1
  %1180 = vsyncmov %s1179
  %s1181 = vpop.sfrf %1180
  %p1182 = scmp.eq.s32.totalorder %s1181, 0
  %p1183 = pneg %p1182
  %1185 = shalt.err (%p1183)

// kernel: _lambda_.3
$region0: #{_lambda_.3}
  #allocation0 [shape = 'u32[]', space=smem, size = 0x4, offset = 0x4, fixed_abs, tag = 'smem constant byte address 0x4 - core index']
  #allocation1 [shape = 'u32[72,128]{1,0:T(1,128)}', space=vmem, size = 0x9000, scoped, tag = 'internal scratch']
  #allocation2 [shape = 'bf16[24,128]{1,0:T(8,128)(2,1)}', space=vmem, size = 0x1800, scoped, tag = 'scratch operand']
  #allocation3 [shape = 'bf16[20,128]{1,0:T(8,128)(2,1)}', space=vmem, size = 0x1800, scoped, tag = 'scratch operand']
  #allocation4 [shape = 'bf16[16,128]{1,0:T(8,128)(2,1)}', space=vmem, size = 0x1000, scoped, tag = 'scratch operand']
  #allocation5 [shape = 'bf16[16,128]{1,0:T(8,128)(2,1)}', space=vmem, size = 0x1000, scoped, tag = 'scratch operand']
  #allocation6 [shape = 's32[2]{0}', space=sflag, size = 0x8, scoped, tag = 'scratch operand']
  #allocation11 [shape = 's32[]', space=sflag, size = 0x4, offset = 0, fixed_abs, tag = 'sflag constant byte address 0x0 - dummy sync flag']
  #allocation12 [shape = 's32[]', space=sflag, size = 0x4, offset = 0, fixed_abs, tag = 'sflag constant byte address 0x0 - dummy sync flag']
  %s0 = inlined_call_operand.vmem [shape: bf16[2,16,128], index: 0, kind: input, shape index: {}, may-alias: {0,1}]
  %s1 = inlined_call_operand.vmem [shape: bf16[2,16,128], index: 1, kind: input, shape index: {}, may-alias: {0,1}]
  %s2 = inlined_call_operand.hbm [shape: bf16[384,128], index: 2, kind: input, shape index: {}]
  %s3 = inlined_call_operand.vmem [shape: f32[1,128], index: 3, kind: input, shape index: {}]
  %s4 = inlined_call_operand.hbm [shape: bf16[384,128], index: 4, kind: input, shape index: {}]
  %s5 = inlined_call_operand.vmem [shape: f32[1,128], index: 5, kind: input, shape index: {}]
  %s6 = inlined_call_operand.vmem [shape: bf16[2,16,128], index: 6, kind: output, shape index: {}]
  %s7 = sld [smem:[#allocation0]]
  $region129: #{_lambda_.3} parent=0
    _
  %s9 = ssub.s32 1, %s7
  %s10 = scalar_select 0, %s9, %s7
  $region1: #{_lambda_.3} parent=0
    #allocation7 [shape = 'u8[98304]{0}', space=vmem, size = 0x18000, scoped, tag = 'input window, operand 2, single buffered']
    #allocation8 [shape = 's32[2]{0}', space=sflag, size = 0x8, scoped, tag = 'scoped memory for _lambda_.3']
    #allocation9 [shape = 'u8[98304]{0}', space=vmem, size = 0x18000, scoped, tag = 'input window, operand 4, single buffered']
    #allocation10 [shape = 's32[1]{0}', space=sflag, size = 0x4, scoped, tag = 'scoped memory for _lambda_.3']
    %11 = vsyncpa [#allocation8], 0
    %12 = vsyncpa [#allocation10], 0
    loop: start=0, step=1, limit=4
    $region2: #{_lambda_.3} parent=1 // loop_pre_header
      _
    $region3: #{_lambda_.3} parent=1 // loop_header
      %s14 = sphi 0, %s18
      %p15 = scmp.ge.s32.totalorder %s14, 4
      %s21 = sphi 0, %s33
      %s22 = sphi 0, %s29
      %s23 = sphi 0, %s21
      %s24 = sphi 0, %s22
      %s25 = sphi 0, %s23
      %s26 = sphi 0, %s24
      %s38 = sphi 0, %s40
      %s41 = sphi 0, %s38
      %s42 = sphi 0, %s41
      %s58 = sphi 0, %s42
      %s62 = sphi 0, %s62
      %s64 = sphi 0, %s62
      %s65 = sphi 0, %s64
      %s79 = sphi 0, %s65
      %s83 = sphi 0, %s83
      %s85 = sphi 0, %s83
      %s86 = sphi 0, %s85
      %s100 = sphi 0, %s86
      %s104 = sphi 0, %s104
      %s106 = sphi 0, %s104
      %s107 = sphi 0, %s106
      %s121 = sphi 0, %s107
      %s125 = sphi 0, %s125
      %s127 = sphi 0, %s125
      %s128 = sphi 0, %s127
      %s142 = sphi 0, %s128
      %s150 = sphi 0, %s152
      %s153 = sphi 0, %s150
      %s154 = sphi 0, %s153
      %s170 = sphi 0, %s154
    $region4: #{_lambda_.3} parent=1 // loop_header_branch
      %17 = sbr.rel (%p15) target = $region8
    $region5: #{_lambda_.3} parent=1 // loop_body
      %s19 = ssub.s32 %s14, 1
      %s20 = ssub.s32 %s14, 2
      %s27 = sadd.s32 1, %s22
      %p28 = scmp.ge.s32.totalorder %s27, 1
      %s29 = scalar_select %p28, 0, %s27
      %s30 = sadd.s32 1, %s21
      %s31 = scalar_select %p28, %s30, %s21
      %p32 = scmp.ge.s32.totalorder %s31, 2
      %s33 = scalar_select %p32, 0, %s31
      %s34 = ssub.s32 %s21, %s33
      %s35 = ssub.s32 %s22, %s29
      %s36 = sor.u32 %s34, %s35
      %p37 = scmp.eq.s32.totalorder %s36, 0
      %s39 = sadd.s32 %s38, 1
      %s40 = scalar_select %p37, %s38, %s39
      %p43 = pneg %p37
      %p44 = scmp.eq.s32.totalorder %s14, 1
      %p45 = por %p43, %p44
      %p46 = scmp.ne.s32.totalorder %s38, %s41
      %p47 = scmp.eq.s32.totalorder %s14, 0
      %p48 = por %p46, %p47
      %p49 = scmp.ne.s32.totalorder %s38, %s41
      %p50 = scmp.eq.s32.totalorder %s19, 1
      %p51 = por %p49, %p50
      %p52 = scmp.ne.s32.totalorder %s41, %s42
      %p53 = scmp.eq.s32.totalorder %s19, 0
      %p54 = por %p52, %p53
      %p55 = scmp.ne.s32.totalorder %s41, %s42
      %p56 = scmp.eq.s32.totalorder %s20, 1
      %p57 = por %p55, %p56
      %p59 = scmp.ne.s32.totalorder %s42, %s58
      %p60 = scmp.eq.s32.totalorder %s20, 0
      %p61 = por %p59, %p60
      %s63 = sadd.s32 %s62, 1
      %p66 = scmp.eq.s32.totalorder %s14, 1
      %p67 = scmp.ne.s32.totalorder %s62, %s64
      %p68 = scmp.eq.s32.totalorder %s14, 0
      %p69 = por %p67, %p68
      %p70 = scmp.ne.s32.totalorder %s62, %s64
      %p71 = scmp.eq.s32.totalorder %s19, 1
      %p72 = por %p70, %p71
      %p73 = scmp.ne.s32.totalorder %s64, %s65
      %p74 = scmp.eq.s32.totalorder %s19, 0
      %p75 = por %p73, %p74
      %p76 = scmp.ne.s32.totalorder %s64, %s65
      %p77 = scmp.eq.s32.totalorder %s20, 1
      %p78 = por %p76, %p77
      %p80 = scmp.ne.s32.totalorder %s65, %s79
      %p81 = scmp.eq.s32.totalorder %s20, 0
      %p82 = por %p80, %p81
      %s84 = sadd.s32 %s83, 1
      %p87 = scmp.eq.s32.totalorder %s14, 1
      %p88 = scmp.ne.s32.totalorder %s83, %s85
      %p89 = scmp.eq.s32.totalorder %s14, 0
      %p90 = por %p88, %p89
      %p91 = scmp.ne.s32.totalorder %s83, %s85
      %p92 = scmp.eq.s32.totalorder %s19, 1
      %p93 = por %p91, %p92
      %p94 = scmp.ne.s32.totalorder %s85, %s86
      %p95 = scmp.eq.s32.totalorder %s19, 0
      %p96 = por %p94, %p95
      %p97 = scmp.ne.s32.totalorder %s85, %s86
      %p98 = scmp.eq.s32.totalorder %s20, 1
      %p99 = por %p97, %p98
      %p101 = scmp.ne.s32.totalorder %s86, %s100
      %p102 = scmp.eq.s32.totalorder %s20, 0
      %p103 = por %p101, %p102
      %s105 = sadd.s32 %s104, 1
      %p108 = scmp.eq.s32.totalorder %s14, 1
      %p109 = scmp.ne.s32.totalorder %s104, %s106
      %p110 = scmp.eq.s32.totalorder %s14, 0
      %p111 = por %p109, %p110
      %p112 = scmp.ne.s32.totalorder %s104, %s106
      %p113 = scmp.eq.s32.totalorder %s19, 1
      %p114 = por %p112, %p113
      %p115 = scmp.ne.s32.totalorder %s106, %s107
      %p116 = scmp.eq.s32.totalorder %s19, 0
      %p117 = por %p115, %p116
      %p118 = scmp.ne.s32.totalorder %s106, %s107
      %p119 = scmp.eq.s32.totalorder %s20, 1
      %p120 = por %p118, %p119
      %p122 = scmp.ne.s32.totalorder %s107, %s121
      %p123 = scmp.eq.s32.totalorder %s20, 0
      %p124 = por %p122, %p123
      %s126 = sadd.s32 %s125, 1
      %p129 = scmp.eq.s32.totalorder %s14, 1
      %p130 = scmp.ne.s32.totalorder %s125, %s127
      %p131 = scmp.eq.s32.totalorder %s14, 0
      %p132 = por %p130, %p131
      %p133 = scmp.ne.s32.totalorder %s125, %s127
      %p134 = scmp.eq.s32.totalorder %s19, 1
      %p135 = por %p133, %p134
      %p136 = scmp.ne.s32.totalorder %s127, %s128
      %p137 = scmp.eq.s32.totalorder %s19, 0
      %p138 = por %p136, %p137
      %p139 = scmp.ne.s32.totalorder %s127, %s128
      %p140 = scmp.eq.s32.totalorder %s20, 1
      %p141 = por %p139, %p140
      %p143 = scmp.ne.s32.totalorder %s128, %s142
      %p144 = scmp.eq.s32.totalorder %s20, 0
      %p145 = por %p143, %p144
      %s146 = ssub.s32 %s21, %s33
      %s147 = ssub.s32 %s22, %s29
      %s148 = sor.u32 %s146, %s147
      %p149 = scmp.eq.s32.totalorder %s148, 0
      %s151 = sadd.s32 %s150, 1
      %s152 = scalar_select %p149, %s150, %s151
      %p155 = pneg %p149
      %p156 = scmp.eq.s32.totalorder %s14, 1
      %p157 = por %p155, %p156
      %p158 = scmp.ne.s32.totalorder %s150, %s153
      %p159 = scmp.eq.s32.totalorder %s14, 0
      %p160 = por %p158, %p159
      %p161 = scmp.ne.s32.totalorder %s150, %s153
      %p162 = scmp.eq.s32.totalorder %s19, 1
      %p163 = por %p161, %p162
      %p164 = scmp.ne.s32.totalorder %s153, %s154
      %p165 = scmp.eq.s32.totalorder %s19, 0
      %p166 = por %p164, %p165
      %p167 = scmp.ne.s32.totalorder %s153, %s154
      %p168 = scmp.eq.s32.totalorder %s20, 1
      %p169 = por %p167, %p168
      %p171 = scmp.ne.s32.totalorder %s154, %s170
      %p172 = scmp.eq.s32.totalorder %s20, 0
      %p173 = por %p171, %p172
      %p174 = scmp.le.s32.totalorder 1, %s14
      %p175 = scmp.lt.s32.totalorder %s14, 3
      %p176 = pnand %p174, %p175
      %p177 = pneg %p176
      // Predicated region
      $region9: #{_lambda_.3} parent=5 // pred_check
        _
      $region10: #{_lambda_.3} parent=5 // pred_check_branch
        %179 = sbr.rel (%p176) target = $region12
      $region11: #{_lambda_.3} parent=5 // pred_region
        %s180 = ssub.s32 %s14, 1
        // Predicated region
        $region13: #{_lambda_.3} parent=11 // pred_check
          %p181 = pneg %p75
        $region14: #{_lambda_.3} parent=11 // pred_check_branch
          %183 = sbr.rel (%p181) target = $region16
        $region15: #{_lambda_.3} parent=11 // pred_region
          %185 = vsyncadd [#allocation8], 0
          %s186 = sshll.u32 %s2, 4
          %s187 = int_to_ptr.hbm [resolvable:$true] %s186
          %s188 = sshll.u32 [#allocation7], 4
          %s189 = int_to_ptr.vmem [resolvable:$true] %s188
          %194 = dma.hbm_to_vmem [thread:$0]  %s187, 3072, %s189, [#allocation8], 64, 64, 4
        $region16: #{_lambda_.3} parent=11 // pred_fallthru
          _
        // Predicated region
        $region17: #{_lambda_.3} parent=11 // pred_check
          %p195 = pneg %p96
        $region18: #{_lambda_.3} parent=11 // pred_check_branch
          %197 = sbr.rel (%p195) target = $region20
        $region19: #{_lambda_.3} parent=11 // pred_region
          _
        $region20: #{_lambda_.3} parent=11 // pred_fallthru
          _
        // Predicated region
        $region21: #{_lambda_.3} parent=11 // pred_check
          %p198 = pneg %p117
        $region22: #{_lambda_.3} parent=11 // pred_check_branch
          %200 = sbr.rel (%p198) target = $region24
        $region23: #{_lambda_.3} parent=11 // pred_region
          %202 = vsyncadd [#allocation10], 0
          %s203 = sshll.u32 %s4, 4
          %s204 = int_to_ptr.hbm [resolvable:$true] %s203
          %s205 = sshll.u32 [#allocation9], 4
          %s206 = int_to_ptr.vmem [resolvable:$true] %s205
          %211 = dma.hbm_to_vmem [thread:$0]  %s204, 3072, %s206, [#allocation10], 64, 64, 4
        $region24: #{_lambda_.3} parent=11 // pred_fallthru
          _
        // Predicated region
        $region25: #{_lambda_.3} parent=11 // pred_check
          %p212 = pneg %p138
        $region26: #{_lambda_.3} parent=11 // pred_check_branch
          %214 = sbr.rel (%p212) target = $region28
        $region27: #{_lambda_.3} parent=11 // pred_region
          _
        $region28: #{_lambda_.3} parent=11 // pred_fallthru
          _
      $region12: #{_lambda_.3} parent=5 // pred_fallthru
        _
      %p215 = scmp.lt.s32.totalorder %s14, 2
      // Predicated region
      $region29: #{_lambda_.3} parent=5 // pred_check
        %p216 = pneg %p215
      $region30: #{_lambda_.3} parent=5 // pred_check_branch
        %218 = sbr.rel (%p216) target = $region32
      $region31: #{_lambda_.3} parent=5 // pred_region
        // Predicated region
        $region33: #{_lambda_.3} parent=31 // pred_check
          %p219 = pneg %p48
        $region34: #{_lambda_.3} parent=31 // pred_check_branch
          %221 = sbr.rel (%p219) target = $region36
        $region35: #{_lambda_.3} parent=31 // pred_region
          %s222 = smul.u32 2, %s22
          %p223 = scmp.lt.s32.totalorder %s21, 1
          %s224 = scalar_select %p223, %s21, 1
          %p225 = scmp.lt.s32.totalorder %s222, 1
          %s226 = scalar_select %p225, %s222, 1
          %s227 = smul.addr %s224, 2
          %s228 = sadd.s32 %s226, %s227
          %s229 = smul.addr %s228, 4
          %s230 = scalar_lea.vmem %s1, %s229
          %s231 = smul.u32 2, %s22
        $region36: #{_lambda_.3} parent=31 // pred_fallthru
          _
      $region32: #{_lambda_.3} parent=5 // pred_fallthru
        _
      %p232 = scmp.le.s32.totalorder 1, %s14
      %p233 = scmp.lt.s32.totalorder %s14, 3
      %p234 = pnand %p232, %p233
      %p235 = pneg %p234
      // Predicated region
      $region37: #{_lambda_.3} parent=5 // pred_check
        _
      $region38: #{_lambda_.3} parent=5 // pred_check_branch
        %237 = sbr.rel (%p234) target = $region40
      $region39: #{_lambda_.3} parent=5 // pred_region
        %s238 = ssub.s32 %s14, 1
        // Predicated region
        $region41: #{_lambda_.3} parent=39 // pred_check
          %p239 = pneg %p75
        $region42: #{_lambda_.3} parent=39 // pred_check_branch
          %241 = sbr.rel (%p239) target = $region44
        $region43: #{_lambda_.3} parent=39 // pred_region
          %243 = dma.done [#allocation8], 3072
        $region44: #{_lambda_.3} parent=39 // pred_fallthru
          _
        // Predicated region
        $region45: #{_lambda_.3} parent=39 // pred_check
          %p244 = pneg %p117
        $region46: #{_lambda_.3} parent=39 // pred_check_branch
          %246 = sbr.rel (%p244) target = $region48
        $region47: #{_lambda_.3} parent=39 // pred_region
          %248 = dma.done [#allocation10], 3072
        $region48: #{_lambda_.3} parent=39 // pred_fallthru
          _
        %s249 = smul.u32 2, %s24
        %p250 = scmp.lt.s32.totalorder %s23, 1
        %s251 = scalar_select %p250, %s23, 1
        %p252 = scmp.lt.s32.totalorder %s249, 1
        %s253 = scalar_select %p252, %s249, 1
        %s254 = smul.addr %s251, 2
        %s255 = sadd.s32 %s253, %s254
        %s256 = smul.addr %s255, 4
        %s257 = scalar_lea.vmem %s1, %s256
        %p258 = pneg %p54
        %p259 = pneg %p51
        %p260 = pneg %p75
        %p261 = pneg %p72
        %p262 = pneg %p96
        %p263 = pneg %p93
        %p264 = pneg %p117
        %p265 = pneg %p114
        %p266 = pneg %p138
        %p267 = pneg %p135
        %p268 = pneg %p166
        %p269 = pneg %p163
        %s270 = smul.u32 2, %s24
        %p271 = scmp.lt.s32.totalorder %s23, 1
        %s272 = scalar_select %p271, %s23, 1
        %p273 = scmp.lt.s32.totalorder %s270, 1
        %s274 = scalar_select %p273, %s270, 1
        %s275 = smul.addr %s272, 2
        %s276 = sadd.s32 %s274, %s275
        %s277 = smul.addr %s276, 4
        %s278 = scalar_lea.vmem %s6, %s277
        %s279 = smul.u32 2, %s24
        %p280 = scmp.lt.s32.totalorder %s23, 1
        %s281 = scalar_select %p280, %s23, 1
        %p282 = scmp.lt.s32.totalorder %s279, 1
        %s283 = scalar_select %p282, %s279, 1
        %s284 = smul.addr %s281, 2
        %s285 = sadd.s32 %s283, %s284
        %s286 = smul.addr %s285, 4
        %s287 = scalar_lea.vmem %s1, %s286
        %s288 = smul.u32 2, %s24
        %s289 = smul.u32 2, %s24
        %p290 = scmp.lt.s32.totalorder %s23, 1
        %s291 = scalar_select %p290, %s23, 1
        %p292 = scmp.lt.s32.totalorder %s289, 1
        %s293 = scalar_select %p292, %s289, 1
        %s294 = smul.addr %s291, 2
        %s295 = sadd.s32 %s293, %s294
        %s296 = smul.addr %s295, 4
        %s297 = scalar_lea.vmem %s6, %s296
        %s298 = smul.u32 2, %s24
        %v299 = vld [vmem:[%s287] sm:$0xf]
        %v300 = vld [vmem:[%s287 + $0x4] sm:$0xf]
        %s301 = smul.u32 %s23, 2
        %s302 = smul.addr %s301, 4
        %s303 = scalar_lea.vmem %s0, %s302
        // Predicated region
        $region49: #{_lambda_.3} parent=39 // pred_check
          _
        $region50: #{_lambda_.3} parent=39 // pred_check_branch
          %305 = sbr.rel (0) target = $region52
        $region51: #{_lambda_.3} parent=39 // pred_region
          // Predicated region
          $region64: #{_lambda_.3} parent=51 // pred_check
            _
          $region65: #{_lambda_.3} parent=51 // pred_check_branch
            %321 = sbr.rel (0) target = $region67
          $region66: #{_lambda_.3} parent=51 // pred_region
            loop: start=0, step=1, limit=1
            $region68: #{_lambda_.3} parent=66 // loop_pre_header
              _
            $region69: #{_lambda_.3} parent=66 // loop_header
              %s323 = sphi 0, %s327
              %p324 = scmp.ge.s32.totalorder %s323, 1
              %s328 = sphi %s303, %s303
              %s329 = sphi [#allocation4], [#allocation4]
            $region70: #{_lambda_.3} parent=66 // loop_header_branch
              %326 = sbr.rel (%p324) target = $region74
            $region71: #{_lambda_.3} parent=66 // loop_body
              %v330 = vld [vmem:[%s328] sm:$0xff]
              %331 = vst [vmem:[%s329] sm:$0xff] %v330
            $region72: #{_lambda_.3} parent=66 // loop_footer
              %s327 = sadd.s32 1, %s323
            $region73: #{_lambda_.3} parent=66 // loop_footer_branch
              %322 = sbr.rel target = $region69
            $region74: #{_lambda_.3} parent=66 // loop_exit
              _
          $region67: #{_lambda_.3} parent=51 // pred_fallthru
            _
          // Predicated region
          $region75: #{_lambda_.3} parent=51 // pred_check
            _
          $region76: #{_lambda_.3} parent=51 // pred_check_branch
            %333 = sbr.rel target = $region78
          $region77: #{_lambda_.3} parent=51 // pred_region
            _
          $region78: #{_lambda_.3} parent=51 // pred_fallthru
            _
        $region52: #{_lambda_.3} parent=39 // pred_fallthru
          _
        // Predicated region
        $region53: #{_lambda_.3} parent=39 // pred_check
          _
        $region54: #{_lambda_.3} parent=39 // pred_check_branch
          %307 = sbr.rel target = $region56
        $region55: #{_lambda_.3} parent=39 // pred_region
          %s309 = ssub.s32 256, 1
          loop: start=0, step=1, limit=1
          $region57: #{_lambda_.3} parent=55 // loop_pre_header
            _
          $region58: #{_lambda_.3} parent=55 // loop_header
            %s311 = sphi 0, %s315
            %p312 = scmp.ge.s32.totalorder %s311, 1
            %s316 = sphi %s303, %s303
            %s317 = sphi [#allocation4], [#allocation4]
          $region59: #{_lambda_.3} parent=55 // loop_header_branch
            %314 = sbr.rel (%p312) target = $region63
          $region60: #{_lambda_.3} parent=55 // loop_body
            %v318 = vld [vmem:[%s316] sm:%s309]
            %319 = vst [vmem:[%s317] sm:%s309] %v318
          $region61: #{_lambda_.3} parent=55 // loop_footer
            %s315 = sadd.s32 1, %s311
          $region62: #{_lambda_.3} parent=55 // loop_footer_branch
            %310 = sbr.rel target = $region58
          $region63: #{_lambda_.3} parent=55 // loop_exit
            _
        $region56: #{_lambda_.3} parent=39 // pred_fallthru
          _
        // Predicated region
        $region79: #{_lambda_.3} parent=39 // pred_check
          _
        $region80: #{_lambda_.3} parent=39 // pred_check_branch
          %336 = sbr.rel (0) target = $region82
        $region81: #{_lambda_.3} parent=39 // pred_region
          %337 = vsyncadd [#allocation6], 128
        $region82: #{_lambda_.3} parent=39 // pred_fallthru
          _
        %s338 = scalar_lea.sflag [#allocation6], 1
        // Predicated region
        $region83: #{_lambda_.3} parent=39 // pred_check
          _
        $region84: #{_lambda_.3} parent=39 // pred_check_branch
          %340 = sbr.rel (0) target = $region86
        $region85: #{_lambda_.3} parent=39 // pred_region
          // Predicated region
          $region98: #{_lambda_.3} parent=85 // pred_check
            _
          $region99: #{_lambda_.3} parent=85 // pred_check_branch
            %356 = sbr.rel (0) target = $region101
          $region100: #{_lambda_.3} parent=85 // pred_region
            loop: start=0, step=1, limit=1
            $region102: #{_lambda_.3} parent=100 // loop_pre_header
              _
            $region103: #{_lambda_.3} parent=100 // loop_header
              %s358 = sphi 0, %s362
              %p359 = scmp.ge.s32.totalorder %s358, 1
              %s363 = sphi %s303, %s303
              %s364 = sphi [#allocation5], [#allocation5]
            $region104: #{_lambda_.3} parent=100 // loop_header_branch
              %361 = sbr.rel (%p359) target = $region108
            $region105: #{_lambda_.3} parent=100 // loop_body
              %v365 = vld [vmem:[%s363] sm:$0xff]
              %366 = vst [vmem:[%s364] sm:$0xff] %v365
            $region106: #{_lambda_.3} parent=100 // loop_footer
              %s362 = sadd.s32 1, %s358
            $region107: #{_lambda_.3} parent=100 // loop_footer_branch
              %357 = sbr.rel target = $region103
            $region108: #{_lambda_.3} parent=100 // loop_exit
              _
          $region101: #{_lambda_.3} parent=85 // pred_fallthru
            _
          // Predicated region
          $region109: #{_lambda_.3} parent=85 // pred_check
            _
          $region110: #{_lambda_.3} parent=85 // pred_check_branch
            %368 = sbr.rel target = $region112
          $region111: #{_lambda_.3} parent=85 // pred_region
            _
          $region112: #{_lambda_.3} parent=85 // pred_fallthru
            _
        $region86: #{_lambda_.3} parent=39 // pred_fallthru
          _
        // Predicated region
        $region87: #{_lambda_.3} parent=39 // pred_check
          _
        $region88: #{_lambda_.3} parent=39 // pred_check_branch
          %342 = sbr.rel target = $region90
        $region89: #{_lambda_.3} parent=39 // pred_region
          %s344 = ssub.s32 256, 1
          loop: start=0, step=1, limit=1
          $region91: #{_lambda_.3} parent=89 // loop_pre_header
            _
          $region92: #{_lambda_.3} parent=89 // loop_header
            %s346 = sphi 0, %s350
            %p347 = scmp.ge.s32.totalorder %s346, 1
            %s351 = sphi %s303, %s303
            %s352 = sphi [#allocation5], [#allocation5]
          $region93: #{_lambda_.3} parent=89 // loop_header_branch
            %349 = sbr.rel (%p347) target = $region97
          $region94: #{_lambda_.3} parent=89 // loop_body
            %v353 = vld [vmem:[%s351] sm:%s344]
            %354 = vst [vmem:[%s352] sm:%s344] %v353
          $region95: #{_lambda_.3} parent=89 // loop_footer
            %s350 = sadd.s32 1, %s346
          $region96: #{_lambda_.3} parent=89 // loop_footer_branch
            %345 = sbr.rel target = $region92
          $region97: #{_lambda_.3} parent=89 // loop_exit
            _
        $region90: #{_lambda_.3} parent=39 // pred_fallthru
          _
        // Predicated region
        $region113: #{_lambda_.3} parent=39 // pred_check
          _
        $region114: #{_lambda_.3} parent=39 // pred_check_branch
          %371 = sbr.rel (0) target = $region116
        $region115: #{_lambda_.3} parent=39 // pred_region
          %372 = vsyncadd %s338, 128
        $region116: #{_lambda_.3} parent=39 // pred_fallthru
          _
        %vm375 = vcmask 1041408
        %vm376 = vcmask 1045508
        %vm377 = vmor %vm375, %vm376
        %v378 = vrot.slane %v299, 6
        %v379 = vrot.slane %v378, 4
        %v380 = vrot.slane %v300, 6
        %v381 = vsel %vm377, %v379, %v380
        %v382 = vrot.slane %v380, 4
        %386 = vst [vmem:[#allocation2] sm:$0xc] %v378
        %387 = vst [vmem:[#allocation2 + $0x4] sm:$0xf] %v381
        %388 = vst [vmem:[#allocation2 + $0x8] sm:$0x3] %v382
        %s389 = smul.u32 4, 2
        %s390 = smul.u32 %s389, 1
        %s391 = sshll.u32 %s390, 4
        %392 = dma.done [#allocation6], %s391
        %v393 = vld [vmem:[#allocation4 + $0x4] sm:$0xc]
        %v395 = vrot.slane %v393, 6
        %v396 = vrot.slane %v395, 4
        %398 = vst [vmem:[#allocation2] sm:$0x3] %v396
        %s399 = sshll.u32 %s390, 4
        %400 = dma.done %s338, %s399
        %v401 = vld [vmem:[#allocation5] sm:$0x3]
        %v403 = vrot.slane %v401, 6
        %405 = vst [vmem:[#allocation2 + $0x8] sm:$0xc] %v403
        %v406 = vld [vmem:[#allocation2] sm:$0xf]
        %v407 = vld [vmem:[#allocation2 + $0x4] sm:$0xf]
        %v408 = vld [vmem:[#allocation2 + $0x8] sm:$0x3]
        %v409 = vld [vmem:[#allocation7] sm:$0xf]
        %v410 = vld [vmem:[#allocation7 + $0x4] sm:$0xf]
        %v411 = vld [vmem:[#allocation7 + $0x8] sm:$0xf]
        %v412 = vld [vmem:[#allocation7 + $0xc] sm:$0xf]
        %v413 = vld [vmem:[#allocation7 + $0x10] sm:$0xf]
        %v414 = vld [vmem:[#allocation7 + $0x14] sm:$0xf]
        %v415 = vld [vmem:[#allocation7 + $0x18] sm:$0xf]
        %v416 = vld [vmem:[#allocation7 + $0x1c] sm:$0xf]
        %v417 = vld [vmem:[#allocation7 + $0x20] sm:$0xf]
        %v418 = vld [vmem:[#allocation7 + $0x24] sm:$0xf]
        %v419 = vld [vmem:[#allocation7 + $0x28] sm:$0xf]
        %v420 = vld [vmem:[#allocation7 + $0x2c] sm:$0xf]
        %v421 = vld [vmem:[#allocation7 + $0x30] sm:$0xf]
        %v422 = vld [vmem:[#allocation7 + $0x34] sm:$0xf]
        %v423 = vld [vmem:[#allocation7 + $0x38] sm:$0xf]
        %v424 = vld [vmem:[#allocation7 + $0x3c] sm:$0xf]
        %v425 = vld [vmem:[#allocation2] sm:$0xe]
        %v426 = vld [vmem:[#allocation2 + $0x8] sm:$0x7]
        %v427 = vld [vmem:[#allocation7 + $0x40] sm:$0xf]
        %v428 = vld [vmem:[#allocation7 + $0x44] sm:$0xf]
        %v429 = vld [vmem:[#allocation7 + $0x48] sm:$0xf]
        %v430 = vld [vmem:[#allocation7 + $0x4c] sm:$0xf]
        %v431 = vld [vmem:[#allocation7 + $0x50] sm:$0xf]
        %v432 = vld [vmem:[#allocation7 + $0x54] sm:$0xf]
        %v433 = vld [vmem:[#allocation7 + $0x58] sm:$0xf]
        %v434 = vld [vmem:[#allocation7 + $0x5c] sm:$0xf]
        %v435 = vld [vmem:[#allocation7 + $0x60] sm:$0xf]
        %v436 = vld [vmem:[#allocation7 + $0x64] sm:$0xf]
        %v437 = vld [vmem:[#allocation7 + $0x68] sm:$0xf]
        %v438 = vld [vmem:[#allocation7 + $0x6c] sm:$0xf]
        %v439 = vld [vmem:[#allocation7 + $0x70] sm:$0xf]
        %v440 = vld [vmem:[#allocation7 + $0x74] sm:$0xf]
        %v441 = vld [vmem:[#allocation7 + $0x78] sm:$0xf]
        %v442 = vld [vmem:[#allocation7 + $0x7c] sm:$0xf]
        %v446 = vunpack.c.l.b16 %v425
        %v447 = vunpack.c.l.b16 %v407
        %v448 = vunpack.c.l.b16 %v426
        %v449 = vpack.c.b16 %v447, %v446
        %v450 = vpack.c.b16 %v448, %v448
        %vm451 = vcmask 1046528
        %v452 = vrot.slane %v449, 1
        %v453 = vrot.slane %v450, 1
        %v454 = vsel %vm451, %v452, %v453
        %v473 = vunpack.c.l.b16 %v427
        %v474 = vunpack.c.l.b16 %v428
        %v475 = vunpack.c.l.b16 %v429
        %v476 = vunpack.c.l.b16 %v430
        %v477 = vunpack.c.l.b16 %v431
        %v478 = vunpack.c.l.b16 %v432
        %v479 = vunpack.c.l.b16 %v433
        %v480 = vunpack.c.l.b16 %v434
        %v481 = vunpack.c.l.b16 %v435
        %v482 = vunpack.c.l.b16 %v436
        %v483 = vunpack.c.l.b16 %v437
        %v484 = vunpack.c.l.b16 %v438
        %v485 = vunpack.c.l.b16 %v439
        %v486 = vunpack.c.l.b16 %v440
        %v487 = vunpack.c.l.b16 %v441
        %v488 = vunpack.c.l.b16 %v442
        %v489 = vpack.c.b16 %v474, %v473
        %v490 = vpack.c.b16 %v476, %v475
        %v491 = vpack.c.b16 %v478, %v477
        %v492 = vpack.c.b16 %v480, %v479
        %v493 = vpack.c.b16 %v482, %v481
        %v494 = vpack.c.b16 %v484, %v483
        %v495 = vpack.c.b16 %v486, %v485
        %v496 = vpack.c.b16 %v488, %v487
        %505 = vmatpush.bf16.msra.mxu0 %v496
        %506 = vmatpush.bf16.msra.mxu0 %v495
        %507 = vmatpush.bf16.msra.mxu0 %v494
        %508 = vmatpush.bf16.msra.mxu0 %v493
        %509 = vmatpush.bf16.msra.mxu0 %v492
        %510 = vmatpush.bf16.msra.mxu0 %v491
        %511 = vmatpush.bf16.msra.mxu0 %v490
        %512 = vmatpush.bf16.msra.mxu0 %v489
        %513 = vmatmul.bf16.gmra.mxu0 %v454
        %v514 = vpop.f32.mrf.mxu0
        %v515 = vadd.f32 0.0, %v514
        %v516 = vpop.f32.mrf.mxu0
        %v517 = vadd.f32 0.0, %v516
        %518 = vmatmul.bf16.gmra.mxu0 %v453
        %v519 = vpop.f32.mrf.mxu0
        %v520 = vadd.f32 0.0, %v519
        %v521 = vpop.f32.mrf.mxu0
        %522 = vdwg.mxu0
        %v525 = vunpack.c.l.b16 %v406
        %v526 = vunpack.c.l.b16 %v408
        %v527 = vpack.c.b16 %v447, %v525
        %v528 = vpack.c.b16 %v526, %v526
        %v547 = vunpack.c.l.b16 %v409
        %v548 = vunpack.c.l.b16 %v410
        %v549 = vunpack.c.l.b16 %v411
        %v550 = vunpack.c.l.b16 %v412
        %v551 = vunpack.c.l.b16 %v413
        %v552 = vunpack.c.l.b16 %v414
        %v553 = vunpack.c.l.b16 %v415
        %v554 = vunpack.c.l.b16 %v416
        %v555 = vunpack.c.l.b16 %v417
        %v556 = vunpack.c.l.b16 %v418
        %v557 = vunpack.c.l.b16 %v419
        %v558 = vunpack.c.l.b16 %v420
        %v559 = vunpack.c.l.b16 %v421
        %v560 = vunpack.c.l.b16 %v422
        %v561 = vunpack.c.l.b16 %v423
        %v562 = vunpack.c.l.b16 %v424
        %v563 = vpack.c.b16 %v548, %v547
        %v564 = vpack.c.b16 %v550, %v549
        %v565 = vpack.c.b16 %v552, %v551
        %v566 = vpack.c.b16 %v554, %v553
        %v567 = vpack.c.b16 %v556, %v555
        %v568 = vpack.c.b16 %v558, %v557
        %v569 = vpack.c.b16 %v560, %v559
        %v570 = vpack.c.b16 %v562, %v561
        %579 = vmatpush.bf16.msra.mxu0 %v570
        %580 = vmatpush.bf16.msra.mxu0 %v569
        %581 = vmatpush.bf16.msra.mxu0 %v568
        %582 = vmatpush.bf16.msra.mxu0 %v567
        %583 = vmatpush.bf16.msra.mxu0 %v566
        %584 = vmatpush.bf16.msra.mxu0 %v565
        %585 = vmatpush.bf16.msra.mxu0 %v564
        %586 = vmatpush.bf16.msra.mxu0 %v563
        %587 = vmatmul.bf16.gmra.mxu0 %v527
        %v588 = vpop.f32.mrf.mxu0
        %v589 = vadd.f32 %v515, %v588
        %v590 = vpop.f32.mrf.mxu0
        %v591 = vadd.f32 %v517, %v590
        %592 = vmatmul.bf16.gmra.mxu0 %v528
        %v593 = vpop.f32.mrf.mxu0
        %v594 = vadd.f32 %v520, %v593
        %v595 = vpop.f32.mrf.mxu0
        %596 = vdwg.mxu0
        %v597 = vld [vmem:[#allocation2] sm:$0xc]
        %v598 = vld [vmem:[#allocation2 + $0x8] sm:$0xf]
        %v599 = vld [vmem:[#allocation7 + $0x80] sm:$0xf]
        %v600 = vld [vmem:[#allocation7 + $0x84] sm:$0xf]
        %v601 = vld [vmem:[#allocation7 + $0x88] sm:$0xf]
        %v602 = vld [vmem:[#allocation7 + $0x8c] sm:$0xf]
        %v603 = vld [vmem:[#allocation7 + $0x90] sm:$0xf]
        %v604 = vld [vmem:[#allocation7 + $0x94] sm:$0xf]
        %v605 = vld [vmem:[#allocation7 + $0x98] sm:$0xf]
        %v606 = vld [vmem:[#allocation7 + $0x9c] sm:$0xf]
        %v607 = vld [vmem:[#allocation7 + $0xa0] sm:$0xf]
        %v608 = vld [vmem:[#allocation7 + $0xa4] sm:$0xf]
        %v609 = vld [vmem:[#allocation7 + $0xa8] sm:$0xf]
        %v610 = vld [vmem:[#allocation7 + $0xac] sm:$0xf]
        %v611 = vld [vmem:[#allocation7 + $0xb0] sm:$0xf]
        %v612 = vld [vmem:[#allocation7 + $0xb4] sm:$0xf]
        %v613 = vld [vmem:[#allocation7 + $0xb8] sm:$0xf]
        %v614 = vld [vmem:[#allocation7 + $0xbc] sm:$0xf]
        %v617 = vunpack.c.l.b16 %v597
        %v618 = vunpack.c.l.b16 %v598
        %v619 = vpack.c.b16 %v447, %v617
        %v620 = vpack.c.b16 %v618, %v618
        %vm621 = vcmask 1045504
        %v622 = vrot.slane %v619, 2
        %v623 = vrot.slane %v620, 2
        %v624 = vsel %vm621, %v622, %v623
        %v643 = vunpack.c.l.b16 %v599
        %v644 = vunpack.c.l.b16 %v600
        %v645 = vunpack.c.l.b16 %v601
        %v646 = vunpack.c.l.b16 %v602
        %v647 = vunpack.c.l.b16 %v603
        %v648 = vunpack.c.l.b16 %v604
        %v649 = vunpack.c.l.b16 %v605
        %v650 = vunpack.c.l.b16 %v606
        %v651 = vunpack.c.l.b16 %v607
        %v652 = vunpack.c.l.b16 %v608
        %v653 = vunpack.c.l.b16 %v609
        %v654 = vunpack.c.l.b16 %v610
        %v655 = vunpack.c.l.b16 %v611
        %v656 = vunpack.c.l.b16 %v612
        %v657 = vunpack.c.l.b16 %v613
        %v658 = vunpack.c.l.b16 %v614
        %v659 = vpack.c.b16 %v644, %v643
        %v660 = vpack.c.b16 %v646, %v645
        %v661 = vpack.c.b16 %v648, %v647
        %v662 = vpack.c.b16 %v650, %v649
        %v663 = vpack.c.b16 %v652, %v651
        %v664 = vpack.c.b16 %v654, %v653
        %v665 = vpack.c.b16 %v656, %v655
        %v666 = vpack.c.b16 %v658, %v657
        %675 = vmatpush.bf16.msra.mxu0 %v666
        %676 = vmatpush.bf16.msra.mxu0 %v665
        %677 = vmatpush.bf16.msra.mxu0 %v664
        %678 = vmatpush.bf16.msra.mxu0 %v663
        %679 = vmatpush.bf16.msra.mxu0 %v662
        %680 = vmatpush.bf16.msra.mxu0 %v661
        %681 = vmatpush.bf16.msra.mxu0 %v660
        %682 = vmatpush.bf16.msra.mxu0 %v659
        %683 = vmatmul.bf16.gmra.mxu0 %v624
        %v684 = vpop.f32.mrf.mxu0
        %v685 = vadd.f32 0.0, %v684
        %v686 = vpop.f32.mrf.mxu0
        %v687 = vadd.f32 0.0, %v686
        %688 = vmatmul.bf16.gmra.mxu0 %v623
        %v689 = vpop.f32.mrf.mxu0
        %v690 = vadd.f32 0.0, %v689
        %v691 = vpop.f32.mrf.mxu0
        %692 = vdwg.mxu0
        %v693 = vadd.f32 %v589, %v685
        %v694 = vadd.f32 %v591, %v687
        %v695 = vadd.f32 %v594, %v690
        %v696 = vld [vmem:[%s3] sm:$0x1]
        %v698 = vperm.slane %v696, 0
        %v700 = vadd.f32 %v693, %v698
        %v701 = vadd.f32 %v694, %v698
        %v702 = vadd.f32 %v695, %v698
        %v703 = vmax.f32 %v700, 0.0
        %v704 = vmax.f32 %v701, 0.0
        %v705 = vmax.f32 %v702, 0.0
        %v706 = vpack.c.bf16 %v703, %v703
        %v707 = vpack.c.bf16 %v704, %v704
        %v708 = vpack.c.bf16 %v705, %v705
        %709 = vst [vmem:[#allocation3] sm:$0xf] %v706
        %710 = vst [vmem:[#allocation3 + $0x4] sm:$0xf] %v707
        %711 = vst [vmem:[#allocation3 + $0x8] sm:$0x3] %v708
        %v712 = vld [vmem:[#allocation3] sm:$0xf]
        %v713 = vld [vmem:[#allocation3 + $0x4] sm:$0xf]
        %v714 = vld [vmem:[#allocation9] sm:$0xf]
        %v715 = vld [vmem:[#allocation9 + $0x4] sm:$0xf]
        %v716 = vld [vmem:[#allocation9 + $0x8] sm:$0xf]
        %v717 = vld [vmem:[#allocation9 + $0xc] sm:$0xf]
        %v718 = vld [vmem:[#allocation9 + $0x10] sm:$0xf]
        %v719 = vld [vmem:[#allocation9 + $0x14] sm:$0xf]
        %v720 = vld [vmem:[#allocation9 + $0x18] sm:$0xf]
        %v721 = vld [vmem:[#allocation9 + $0x1c] sm:$0xf]
        %v722 = vld [vmem:[#allocation9 + $0x20] sm:$0xf]
        %v723 = vld [vmem:[#allocation9 + $0x24] sm:$0xf]
        %v724 = vld [vmem:[#allocation9 + $0x28] sm:$0xf]
        %v725 = vld [vmem:[#allocation9 + $0x2c] sm:$0xf]
        %v726 = vld [vmem:[#allocation9 + $0x30] sm:$0xf]
        %v727 = vld [vmem:[#allocation9 + $0x34] sm:$0xf]
        %v728 = vld [vmem:[#allocation9 + $0x38] sm:$0xf]
        %v729 = vld [vmem:[#allocation9 + $0x3c] sm:$0xf]
        %v730 = vld [vmem:[#allocation3] sm:$0xe]
        %v731 = vld [vmem:[#allocation3 + $0x8] sm:$0x1]
        %v732 = vld [vmem:[#allocation9 + $0x40] sm:$0xf]
        %v733 = vld [vmem:[#allocation9 + $0x44] sm:$0xf]
        %v734 = vld [vmem:[#allocation9 + $0x48] sm:$0xf]
        %v735 = vld [vmem:[#allocation9 + $0x4c] sm:$0xf]
        %v736 = vld [vmem:[#allocation9 + $0x50] sm:$0xf]
        %v737 = vld [vmem:[#allocation9 + $0x54] sm:$0xf]
        %v738 = vld [vmem:[#allocation9 + $0x58] sm:$0xf]
        %v739 = vld [vmem:[#allocation9 + $0x5c] sm:$0xf]
        %v740 = vld [vmem:[#allocation9 + $0x60] sm:$0xf]
        %v741 = vld [vmem:[#allocation9 + $0x64] sm:$0xf]
        %v742 = vld [vmem:[#allocation9 + $0x68] sm:$0xf]
        %v743 = vld [vmem:[#allocation9 + $0x6c] sm:$0xf]
        %v744 = vld [vmem:[#allocation9 + $0x70] sm:$0xf]
        %v745 = vld [vmem:[#allocation9 + $0x74] sm:$0xf]
        %v746 = vld [vmem:[#allocation9 + $0x78] sm:$0xf]
        %v747 = vld [vmem:[#allocation9 + $0x7c] sm:$0xf]
        %v751 = vunpack.c.l.b16 %v730
        %v752 = vunpack.c.l.b16 %v713
        %v753 = vunpack.c.l.b16 %v731
        %v754 = vpack.c.b16 %v752, %v751
        %v755 = vpack.c.b16 %v753, %v753
        %v756 = vrot.slane %v754, 1
        %v757 = vrot.slane %v755, 1
        %v758 = vsel %vm451, %v756, %v757
        %v776 = vunpack.c.l.b16 %v732
        %v777 = vunpack.c.l.b16 %v733
        %v778 = vunpack.c.l.b16 %v734
        %v779 = vunpack.c.l.b16 %v735
        %v780 = vunpack.c.l.b16 %v736
        %v781 = vunpack.c.l.b16 %v737
        %v782 = vunpack.c.l.b16 %v738
        %v783 = vunpack.c.l.b16 %v739
        %v784 = vunpack.c.l.b16 %v740
        %v785 = vunpack.c.l.b16 %v741
        %v786 = vunpack.c.l.b16 %v742
        %v787 = vunpack.c.l.b16 %v743
        %v788 = vunpack.c.l.b16 %v744
        %v789 = vunpack.c.l.b16 %v745
        %v790 = vunpack.c.l.b16 %v746
        %v791 = vunpack.c.l.b16 %v747
        %v792 = vpack.c.b16 %v777, %v776
        %v793 = vpack.c.b16 %v779, %v778
        %v794 = vpack.c.b16 %v781, %v780
        %v795 = vpack.c.b16 %v783, %v782
        %v796 = vpack.c.b16 %v785, %v784
        %v797 = vpack.c.b16 %v787, %v786
        %v798 = vpack.c.b16 %v789, %v788
        %v799 = vpack.c.b16 %v791, %v790
        %808 = vmatpush.bf16.msra.mxu0 %v799
        %809 = vmatpush.bf16.msra.mxu0 %v798
        %810 = vmatpush.bf16.msra.mxu0 %v797
        %811 = vmatpush.bf16.msra.mxu0 %v796
        %812 = vmatpush.bf16.msra.mxu0 %v795
        %813 = vmatpush.bf16.msra.mxu0 %v794
        %814 = vmatpush.bf16.msra.mxu0 %v793
        %815 = vmatpush.bf16.msra.mxu0 %v792
        %816 = vmatmul.bf16.gmra.mxu0 %v758
        %v817 = vpop.f32.mrf.mxu0
        %v818 = vadd.f32 0.0, %v817
        %v819 = vpop.f32.mrf.mxu0
        %v820 = vadd.f32 0.0, %v819
        %821 = vdwg.mxu0
        %v823 = vunpack.c.l.b16 %v712
        %v824 = vpack.c.b16 %v752, %v823
        %v842 = vunpack.c.l.b16 %v714
        %v843 = vunpack.c.l.b16 %v715
        %v844 = vunpack.c.l.b16 %v716
        %v845 = vunpack.c.l.b16 %v717
        %v846 = vunpack.c.l.b16 %v718
        %v847 = vunpack.c.l.b16 %v719
        %v848 = vunpack.c.l.b16 %v720
        %v849 = vunpack.c.l.b16 %v721
        %v850 = vunpack.c.l.b16 %v722
        %v851 = vunpack.c.l.b16 %v723
        %v852 = vunpack.c.l.b16 %v724
        %v853 = vunpack.c.l.b16 %v725
        %v854 = vunpack.c.l.b16 %v726
        %v855 = vunpack.c.l.b16 %v727
        %v856 = vunpack.c.l.b16 %v728
        %v857 = vunpack.c.l.b16 %v729
        %v858 = vpack.c.b16 %v843, %v842
        %v859 = vpack.c.b16 %v845, %v844
        %v860 = vpack.c.b16 %v847, %v846
        %v861 = vpack.c.b16 %v849, %v848
        %v862 = vpack.c.b16 %v851, %v850
        %v863 = vpack.c.b16 %v853, %v852
        %v864 = vpack.c.b16 %v855, %v854
        %v865 = vpack.c.b16 %v857, %v856
        %874 = vmatpush.bf16.msra.mxu0 %v865
        %875 = vmatpush.bf16.msra.mxu0 %v864
        %876 = vmatpush.bf16.msra.mxu0 %v863
        %877 = vmatpush.bf16.msra.mxu0 %v862
        %878 = vmatpush.bf16.msra.mxu0 %v861
        %879 = vmatpush.bf16.msra.mxu0 %v860
        %880 = vmatpush.bf16.msra.mxu0 %v859
        %881 = vmatpush.bf16.msra.mxu0 %v858
        %882 = vmatmul.bf16.gmra.mxu0 %v824
        %v883 = vpop.f32.mrf.mxu0
        %v884 = vadd.f32 %v818, %v883
        %v885 = vpop.f32.mrf.mxu0
        %v886 = vadd.f32 %v820, %v885
        %887 = vdwg.mxu0
        %v888 = vld [vmem:[#allocation3] sm:$0xc]
        %v889 = vld [vmem:[#allocation3 + $0x8] sm:$0x3]
        %v890 = vld [vmem:[#allocation9 + $0x80] sm:$0xf]
        %v891 = vld [vmem:[#allocation9 + $0x84] sm:$0xf]
        %v892 = vld [vmem:[#allocation9 + $0x88] sm:$0xf]
        %v893 = vld [vmem:[#allocation9 + $0x8c] sm:$0xf]
        %v894 = vld [vmem:[#allocation9 + $0x90] sm:$0xf]
        %v895 = vld [vmem:[#allocation9 + $0x94] sm:$0xf]
        %v896 = vld [vmem:[#allocation9 + $0x98] sm:$0xf]
        %v897 = vld [vmem:[#allocation9 + $0x9c] sm:$0xf]
        %v898 = vld [vmem:[#allocation9 + $0xa0] sm:$0xf]
        %v899 = vld [vmem:[#allocation9 + $0xa4] sm:$0xf]
        %v900 = vld [vmem:[#allocation9 + $0xa8] sm:$0xf]
        %v901 = vld [vmem:[#allocation9 + $0xac] sm:$0xf]
        %v902 = vld [vmem:[#allocation9 + $0xb0] sm:$0xf]
        %v903 = vld [vmem:[#allocation9 + $0xb4] sm:$0xf]
        %v904 = vld [vmem:[#allocation9 + $0xb8] sm:$0xf]
        %v905 = vld [vmem:[#allocation9 + $0xbc] sm:$0xf]
        %v908 = vunpack.c.l.b16 %v888
        %v909 = vunpack.c.l.b16 %v889
        %v910 = vpack.c.b16 %v752, %v908
        %v911 = vpack.c.b16 %v909, %v909
        %v912 = vrot.slane %v910, 2
        %v913 = vrot.slane %v911, 2
        %v914 = vsel %vm621, %v912, %v913
        %v932 = vunpack.c.l.b16 %v890
        %v933 = vunpack.c.l.b16 %v891
        %v934 = vunpack.c.l.b16 %v892
        %v935 = vunpack.c.l.b16 %v893
        %v936 = vunpack.c.l.b16 %v894
        %v937 = vunpack.c.l.b16 %v895
        %v938 = vunpack.c.l.b16 %v896
        %v939 = vunpack.c.l.b16 %v897
        %v940 = vunpack.c.l.b16 %v898
        %v941 = vunpack.c.l.b16 %v899
        %v942 = vunpack.c.l.b16 %v900
        %v943 = vunpack.c.l.b16 %v901
        %v944 = vunpack.c.l.b16 %v902
        %v945 = vunpack.c.l.b16 %v903
        %v946 = vunpack.c.l.b16 %v904
        %v947 = vunpack.c.l.b16 %v905
        %v948 = vpack.c.b16 %v933, %v932
        %v949 = vpack.c.b16 %v935, %v934
        %v950 = vpack.c.b16 %v937, %v936
        %v951 = vpack.c.b16 %v939, %v938
        %v952 = vpack.c.b16 %v941, %v940
        %v953 = vpack.c.b16 %v943, %v942
        %v954 = vpack.c.b16 %v945, %v944
        %v955 = vpack.c.b16 %v947, %v946
        %964 = vmatpush.bf16.msra.mxu0 %v955
        %965 = vmatpush.bf16.msra.mxu0 %v954
        %966 = vmatpush.bf16.msra.mxu0 %v953
        %967 = vmatpush.bf16.msra.mxu0 %v952
        %968 = vmatpush.bf16.msra.mxu0 %v951
        %969 = vmatpush.bf16.msra.mxu0 %v950
        %970 = vmatpush.bf16.msra.mxu0 %v949
        %971 = vmatpush.bf16.msra.mxu0 %v948
        %972 = vmatmul.bf16.gmra.mxu0 %v914
        %v973 = vpop.f32.mrf.mxu0
        %v974 = vadd.f32 0.0, %v973
        %v975 = vpop.f32.mrf.mxu0
        %v976 = vadd.f32 0.0, %v975
        %977 = vdwg.mxu0
        %v978 = vadd.f32 %v884, %v974
        %v979 = vadd.f32 %v886, %v976
        %v980 = vld [vmem:[%s5] sm:$0x1]
        %v982 = vperm.slane %v980, 0
        %v984 = vadd.f32 %v978, %v982
        %v985 = vadd.f32 %v979, %v982
        %v986 = vmax.f32 %v984, 0.0
        %v987 = vmax.f32 %v985, 0.0
        %v988 = vunpack.c.l.bf16 %v299
        %v989 = vunpack.c.l.bf16 %v300
        %v990 = vadd.f32 %v986, %v988
        %v991 = vadd.f32 %v987, %v989
        %v992 = vpack.c.bf16 %v990, %v990
        %v993 = vpack.c.bf16 %v991, %v991
        %994 = vst [vmem:[%s297] sm:$0xf] %v992
        %995 = vst [vmem:[%s297 + $0x4] sm:$0xf] %v993
        %s996 = smul.u32 2, %s24
        %p997 = scmp.lt.s32.totalorder %s23, 1
        %s998 = scalar_select %p997, %s23, 1
        %p999 = scmp.lt.s32.totalorder %s996, 1
        %s1000 = scalar_select %p999, %s996, 1
        %s1001 = smul.addr %s998, 2
        %s1002 = sadd.s32 %s1000, %s1001
        %s1003 = smul.addr %s1002, 4
        %s1004 = scalar_lea.vmem %s6, %s1003
        // Predicated region
        $region117: #{_lambda_.3} parent=39 // pred_check
          %p1005 = pneg %p163
        $region118: #{_lambda_.3} parent=39 // pred_check_branch
          %1007 = sbr.rel (%p1005) target = $region120
        $region119: #{_lambda_.3} parent=39 // pred_region
          %s1008 = smul.u32 2, %s24
        $region120: #{_lambda_.3} parent=39 // pred_fallthru
          _
      $region40: #{_lambda_.3} parent=5 // pred_fallthru
        _
      %p1009 = scmp.le.s32.totalorder 2, %s14
      // Predicated region
      $region121: #{_lambda_.3} parent=5 // pred_check
        %p1010 = pneg %p1009
      $region122: #{_lambda_.3} parent=5 // pred_check_branch
        %1012 = sbr.rel (%p1010) target = $region124
      $region123: #{_lambda_.3} parent=5 // pred_region
        %s1013 = ssub.s32 %s14, 2
        // Predicated region
        $region125: #{_lambda_.3} parent=123 // pred_check
          %p1014 = pneg %p169
        $region126: #{_lambda_.3} parent=123 // pred_check_branch
          %1016 = sbr.rel (%p1014) target = $region128
        $region127: #{_lambda_.3} parent=123 // pred_region
          %s1017 = smul.u32 2, %s26
          %p1018 = scmp.lt.s32.totalorder %s25, 1
          %s1019 = scalar_select %p1018, %s25, 1
          %p1020 = scmp.lt.s32.totalorder %s1017, 1
          %s1021 = scalar_select %p1020, %s1017, 1
          %s1022 = smul.addr %s1019, 2
          %s1023 = sadd.s32 %s1021, %s1022
          %s1024 = smul.addr %s1023, 4
          %s1025 = scalar_lea.vmem %s6, %s1024
        $region128: #{_lambda_.3} parent=123 // pred_fallthru
          _
      $region124: #{_lambda_.3} parent=5 // pred_fallthru
        _
    $region6: #{_lambda_.3} parent=1 // loop_footer
      %s18 = sadd.s32 1, %s14
    $region7: #{_lambda_.3} parent=1 // loop_footer_branch
      %13 = sbr.rel target = $region3
    $region8: #{_lambda_.3} parent=1 // loop_exit
      _
    %1026 = vsyncpa [#allocation8], 1
    %s1027 = scalar_lea.sflag [#allocation8], 1
    %1028 = vsyncpa %s1027, 1
    %1029 = vsyncpa [#allocation10], 1
  %1030 = vsyncmov [#allocation6]
  %s1031 = vpop.sfrf %1030
  %p1032 = scmp.eq.s32.totalorder %s1031, 0
  %p1033 = pneg %p1032
  %1035 = shalt.err (%p1033)
  %s1036 = scalar_lea.sflag [#allocation6], 1
  %1037 = vsyncmov %s1036
  %s1038 = vpop.sfrf %1037
  %p1039 = scmp.eq.s32.totalorder %s1038, 0
  %p1040 = pneg %p1039
  %1042 = shalt.err (%p1040)

</llo_original>
